<compile_context>
chip_gen: v7x
topology: tpu7x:2x2x1
jax: 0.10.0
libtpu: 0.0.40
codegen_flags: <defaults>
</compile_context>

<pallas_src>
import functools
import math

import jax
import jax.numpy as jnp
from jax import lax
from jax.experimental import pallas as pl
from jax.experimental.pallas import tpu as pltpu


def _round_up(a, b):
    return (a + b - 1) // b * b


# ------------------------------ Pallas kernel -------------------------------
def _rbx2sr_kernel(x_ref, w_ref, b_ref, o_ref, *, wp, lout):
    """One (sample, row-band) grid step of the fully fused 3x3 conv.

    x_ref : [1, 1, Cin, Lin]  zero-padded input band; channels on sublanes,
                              flattened (rows * Wp) spatial on lanes,
                              Lin = (TH + 3) * Wp.
    w_ref : [9, Cout, Cin]    effective 3x3 kernel, tap-major (index 3*ky+kx);
                              all five branches folded in the wrapper.
    b_ref : [Cout, 1]         all per-channel bias/border constants folded.
    o_ref : [1, Cout, Lout]   output band, lane-dense (Lout % 128 == 0).
    """
    u = x_ref[0, 0]                         # [Cin, Lin]
    L = lout + 2 * wp                       # static operand length

    # kx folded into the contraction: shift the *narrow* [Cin, L] operand
    # (2 lane-offset copies) instead of shifting the wide per-tap outputs.
    xs = (u[:, 0:L], u[:, 1:1 + L], u[:, 2:2 + L])

    acc = None
    for ky in range(3):
        # Three matmuls issued back-to-back so the accumulation can stay in
        # the MXU result buffer (MRB on v7x); q_ky is only [Cout, L].
        q = jnp.dot(w_ref[3 * ky + 0], xs[0], preferred_element_type=jnp.float32)
        q = q + jnp.dot(w_ref[3 * ky + 1], xs[1], preferred_element_type=jnp.float32)
        q = q + jnp.dot(w_ref[3 * ky + 2], xs[2], preferred_element_type=jnp.float32)
        part = q[:, ky * wp: ky * wp + lout]          # ky offsets: 0, Wp, 2*Wp
        acc = part if acc is None else acc + part     # f32 VPU adds

    o_ref[0] = (acc + b_ref[...]).astype(o_ref.dtype)


# ------------------------- wrapper-side helpers ------------------------------
def _vmem_budget_bytes():
    try:
        cap = int(pltpu.get_tpu_info().vmem_capacity_bytes)
    except Exception:                       # conservative (v7x-sized) fallback
        cap = 64 * 1024 * 1024
    return max(32 * 1024 * 1024, min(cap * 3 // 4, 100 * 1024 * 1024))


def _band_geometry(H, W, row_tile, N, Cin, Cout, in_bytes, vmem_budget):
    """Pick the row-band height TH so the per-step working set fits VMEM and
    the grid exposes >= 2 'parallel' steps (v7x has two TensorCores)."""
    TH = max(1, min(row_tile, H))
    if N == 1 and H >= 2:
        TH = min(TH, -(-H // 2))            # force NB >= 2 when batch == 1
    while True:
        Hp = _round_up(H, TH)
        NB = Hp // TH
        # Wp >= W + 2; multiple of 128 for large W (aligned ky offsets, no lane
        # rotates); otherwise just enough so TH*Wp % 128 == 0 (lane-dense out).
        align = 128 if W >= 512 else max(8, 128 // math.gcd(TH, 128))
        Wp = _round_up(W + 2, align)
        Lout = TH * Wp
        Lin = (TH + 3) * Wp
        L = Lout + 2 * Wp
        est = (2 * Cin * Lin * in_bytes     # double-buffered input band
               + 2 * Cout * Lout * 4        # double-buffered output band
               + 3 * Cin * L * in_bytes     # shifted input copies
               + 3 * Cout * L * 4)          # q / acc / slice temporaries
        if est <= vmem_budget // 2 or TH <= 8:
            return TH, Hp, NB, Wp, Lin, Lout
        TH = max(8, TH // 2)


def _fold_params(p, compute_dtype):
    """Fold all five branches into one 3x3 kernel + one bias (exact algebra)."""
    f32 = jnp.float32
    hp = lax.Precision.HIGHEST
    w3 = p['w3'].astype(f32)
    Cout, Cin = int(w3.shape[0]), int(w3.shape[1])

    k0m = p['k0'][:, :, 0, 0].astype(f32)
    a0m = p['a0w'][:, :, 0, 0].astype(f32)
    a2m = p['a2w'][:, :, 0, 0].astype(f32)
    c1m = p['c1w'][:, :, 0, 0].astype(f32)
    l0m = p['l0w'][:, :, 0, 0].astype(f32)
    lap = jnp.array([[0., 1., 0.], [1., -4., 1.], [0., 1., 0.]], f32)

    rk = w3
    rk = rk + jnp.einsum('omyx,mi->oiyx', p['k1'].astype(f32), k0m, precision=hp)
    rk = rk + jnp.einsum('om,mnyx,ni->oiyx', a2m, p['a1w'].astype(f32), a0m,
                         precision=hp)
    rk = rk + jnp.einsum('om,miyx->oiyx', c1m, p['c0w'].astype(f32), precision=hp)
    rk = rk + jnp.einsum('o,yx,oi->oiyx', p['lscale'].astype(f32), lap, l0m,
                         precision=hp)

    rb = p['b3'].astype(f32)
    rb = rb + p['b1'].astype(f32) + jnp.einsum('omyx,m->o', p['k1'].astype(f32),
                                               p['b0'].astype(f32), precision=hp)
    rb = rb + p['a2b'].astype(f32) + jnp.einsum(
        'om,m->o', a2m,
        p['a1b'].astype(f32) + jnp.einsum('mnyx,n->m', p['a1w'].astype(f32),
                                          p['a0b'].astype(f32), precision=hp),
        precision=hp)
    rb = rb + p['c1b'].astype(f32) + jnp.einsum('om,m->o', c1m,
                                                p['c0b'].astype(f32), precision=hp)
    rb = rb + p['lbias'].astype(f32)
    # (l0b drops out exactly: the Laplacian taps sum to zero.)

    w = jnp.transpose(rk, (2, 3, 0, 1)).reshape(9, Cout, Cin).astype(compute_dtype)
    bias = rb.reshape(Cout, 1)              # kept f32: added after f32 accumulation
    return w, bias


# --------------------------------- forward ----------------------------------
def rbx2sr_nores_forward(x_nchw, p, *, row_tile=64, compute_dtype=jnp.float32):
    N, Cin, H, W = (int(d) for d in x_nchw.shape)
    Cout = int(p['b3'].shape[0])

    in_bytes = jnp.dtype(compute_dtype).itemsize
    vmem_budget = _vmem_budget_bytes()
    TH, Hp, NB, Wp, Lin, Lout = _band_geometry(H, W, row_tile, N, Cin, Cout,
                                               in_bytes, vmem_budget)

    w, bias = _fold_params(p, compute_dtype)

    # input glue: channels-first, one zero-pad pass, halo'd row bands.
    xpad = jnp.pad(x_nchw.astype(compute_dtype),
                   ((0, 0), (0, 0), (1, (Hp - H) + 2), (1, Wp - W - 1)))
    if NB == 1:
        xb = xpad.reshape(N, 1, Cin, Lin)   # pure metadata reshape, no copy
    else:
        bands = [xpad[:, :, b * TH: b * TH + TH + 3, :] for b in range(NB)]
        xb = jnp.stack(bands, axis=1).reshape(N, NB, Cin, Lin)
    # TODO(synk): replace the band stack with an in-kernel halo DMA
    # (memory_space=pl.ANY) for very large images to drop the 3/TH re-read.

    out = pl.pallas_call(
        functools.partial(_rbx2sr_kernel, wp=Wp, lout=Lout),
        out_shape=jax.ShapeDtypeStruct((N, Cout, Hp * Wp), jnp.float32),
        grid=(N, NB),
        in_specs=[
            pl.BlockSpec((1, 1, Cin, Lin), lambda n, b: (n, b, 0, 0)),
            pl.BlockSpec((9, Cout, Cin), lambda n, b: (0, 0, 0)),
            pl.BlockSpec((Cout, 1), lambda n, b: (0, 0)),
        ],
        out_specs=pl.BlockSpec((1, Cout, Lout), lambda n, b: (n, 0, b)),
        compiler_params=pltpu.CompilerParams(
            dimension_semantics=("parallel", "parallel"),
            vmem_limit_bytes=vmem_budget),
    )(xb, w, bias)

    # output glue: lane-dense padded slab -> reshape + crop.
    # TODO(synk): skip this crop when the consumer accepts the padded layout.
    return out.reshape(N, Cout, Hp, Wp)[:, :, :H, :W]


# ----------------------- deterministic parameter init -----------------------
def init_params(key, inp_planes, out_planes, depth_multiplier):
    mid = int(out_planes * depth_multiplier)
    ks = jax.random.split(key, 20)

    def nrm(k, shape, s=0.1):
        return jax.random.normal(k, shape, dtype=jnp.float32) * s

    p = {}
    p['w3'], p['b3'] = nrm(ks[0], (out_planes, inp_planes, 3, 3)), nrm(ks[1], (out_planes,))
    # conv1x1-conv3x3
    p['k0'], p['b0'] = nrm(ks[2], (mid, inp_planes, 1, 1)), nrm(ks[3], (mid,))
    p['k1'], p['b1'] = nrm(ks[4], (out_planes, mid, 3, 3)), nrm(ks[5], (out_planes,))
    # conv1x1-conv3x3-conv1x1
    p['a0w'], p['a0b'] = nrm(ks[6], (mid, inp_planes, 1, 1)), nrm(ks[7], (mid,))
    p['a1w'], p['a1b'] = nrm(ks[8], (mid, mid, 3, 3)), nrm(ks[9], (mid,))
    p['a2w'], p['a2b'] = nrm(ks[10], (out_planes, mid, 1, 1)), nrm(ks[11], (out_planes,))
    # conv3x3-conv1x1
    p['c0w'], p['c0b'] = nrm(ks[12], (mid, inp_planes, 3, 3)), nrm(ks[13], (mid,))
    p['c1w'], p['c1b'] = nrm(ks[14], (out_planes, mid, 1, 1)), nrm(ks[15], (out_planes,))
    # conv1x1-laplacian
    p['l0w'], p['l0b'] = nrm(ks[16], (out_planes, inp_planes, 1, 1)), nrm(ks[17], (out_planes,))
    p['lscale'] = nrm(ks[18], (out_planes,), 0.001)
    p['lbias'] = nrm(ks[19], (out_planes,), 0.001)
    return p


# ----------------- pure-JAX reference (branch-by-branch check) ---------------
def _conv_nchw(x, w, b=None, padding=((0, 0), (0, 0)), groups=1):
    y = lax.conv_general_dilated(x, w, (1, 1), padding,
                                 dimension_numbers=('NCHW', 'OIHW', 'NCHW'),
                                 feature_group_count=groups,
                                 precision=lax.Precision.HIGHEST)
    if b is not None:
        y = y + b.reshape(1, -1, 1, 1)
    return y


def reference_forward(x, p):
    out_planes = p['b3'].shape[0]
    y = _conv_nchw(x, p['w3'], p['b3'], padding=((1, 1), (1, 1)))

    y0 = _conv_nchw(x, p['k0'], p['b0'])
    y0 = jnp.pad(y0, ((0, 0), (0, 0), (1, 1), (1, 1)))
    b0 = p['b0'].reshape(1, -1, 1, 1)
    y0 = y0.at[:, :, 0:1, :].set(b0)
    y0 = y0.at[:, :, -1:, :].set(b0)
    y0 = y0.at[:, :, :, 0:1].set(b0)
    y0 = y0.at[:, :, :, -1:].set(b0)
    y = y + _conv_nchw(y0, p['k1'], p['b1'])

    xp = jnp.pad(x, ((0, 0), (0, 0), (1, 1), (1, 1)))
    t = _conv_nchw(xp, p['a0w'], p['a0b'])
    t = _conv_nchw(t, p['a1w'], p['a1b'])
    y = y + _conv_nchw(t, p['a2w'], p['a2b'])

    t = _conv_nchw(xp, p['c0w'], p['c0b'])
    y = y + _conv_nchw(t, p['c1w'], p['c1b'])

    y0 = _conv_nchw(x, p['l0w'], p['l0b'])
    y0 = jnp.pad(y0, ((0, 0), (0, 0), (1, 1), (1, 1)))
    lb0 = p['l0b'].reshape(1, -1, 1, 1)
    y0 = y0.at[:, :, 0:1, :].set(lb0)
    y0 = y0.at[:, :, -1:, :].set(lb0)
    y0 = y0.at[:, :, :, 0:1].set(lb0)
    y0 = y0.at[:, :, :, -1:].set(lb0)
    mask = jnp.zeros((out_planes, 1, 3, 3), jnp.float32)
    mask = mask.at[:, 0, 0, 1].set(1.0)
    mask = mask.at[:, 0, 1, 0].set(1.0)
    mask = mask.at[:, 0, 1, 2].set(1.0)
    mask = mask.at[:, 0, 2, 1].set(1.0)
    mask = mask.at[:, 0, 1, 1].set(-4.0)
    dw = p['lscale'].reshape(-1, 1, 1, 1) * mask
    y = y + _conv_nchw(y0, dw, p['lbias'], groups=out_planes)
    return y


if __name__ == "__main__":
    key = jax.random.PRNGKey(0)
    ka, kb, kc, kd = jax.random.split(key, 4)

    fwd_f32 = jax.jit(rbx2sr_nores_forward)
    fwd_bf16 = jax.jit(functools.partial(rbx2sr_nores_forward,
                                         compute_dtype=jnp.bfloat16))

    # -------- primary config --------
    N, Cin, Cout, H, W = 2, 4, 4, 16, 16
    x = jax.random.normal(ka, (N, Cin, H, W), dtype=jnp.float32)
    params = init_params(kb, Cin, Cout, 2)

    y = jax.block_until_ready(fwd_f32(x, params))
    assert y.shape == (N, Cout, H, W)
    y_ref = reference_forward(x, params)
    err = float(jnp.max(jnp.abs(y - y_ref)))
    if not err < 2e-3:
        raise RuntimeError(f"kernel/reference mismatch (config 1): max abs err = {err}")

    # -------- secondary config: non-square, H not a multiple of the band,
    # Cin != Cout, N=1 (forces >= 2 bands -> exercises halo'd banding) --------
    Nb, Cinb, Coutb, Hb, Wb = 1, 4, 5, 10, 12
    xb_in = jax.random.normal(kc, (Nb, Cinb, Hb, Wb), dtype=jnp.float32)
    params_b = init_params(kd, Cinb, Coutb, 2)

    yb = jax.block_until_ready(fwd_f32(xb_in, params_b))
    assert yb.shape == (Nb, Coutb, Hb, Wb)
    yb_ref = reference_forward(xb_in, params_b)
    errb = float(jnp.max(jnp.abs(yb - yb_ref)))
    if not errb < 2e-3:
        raise RuntimeError(f"kernel/reference mismatch (config 2): max abs err = {errb}")

    # -------- bf16 fast path (v6e/v7x): bf16 matmul operands, f32 accumulation --------
    y16 = jax.block_until_ready(fwd_bf16(x, params))
    assert y16.shape == (N, Cout, H, W)
    err16 = float(jnp.max(jnp.abs(y16 - y_ref)))
    if not err16 < 1e-1:
        raise RuntimeError(f"kernel/reference mismatch (bf16 config): max abs err = {err16}")

    print("KERNEL_OK")
</pallas_src>

<mosaic_0001>
module attributes {stable_mosaic.version = 11 : i64} {
  func.func @_rbx2sr_kernel(%arg0: i32, %arg1: i32, %arg2: memref<1x1x4x456xf32, #tpu.memory_space<vmem>>, %arg3: memref<9x4x4xf32, #tpu.memory_space<vmem>>, %arg4: memref<4x1xf32, #tpu.memory_space<vmem>>, %arg5: memref<1x4x384xf32, #tpu.memory_space<vmem>>) attributes {dimension_semantics = [#tpu.dimension_semantics<parallel>, #tpu.dimension_semantics<parallel>], iteration_bounds = array<i64: 2, 1>, scalar_prefetch = 0 : i64, scratch_operands = 0 : i64, tpu.core_type = #tpu.core_type<tc>, window_params = [{transform_indices = @transform_0, window_bounds = array<i64: 1, 1, 4, 456>}, {pipeline_mode = #tpu.pipeline_mode<synchronous>, transform_indices = @transform_1, window_bounds = array<i64: 9, 4, 4>}, {pipeline_mode = #tpu.pipeline_mode<synchronous>, transform_indices = @transform_2, window_bounds = array<i64: 4, 1>}, {transform_indices = @transform_3, window_bounds = array<i64: 1, 4, 384>}]} {
    %c0 = arith.constant 0 : index
    %c0_0 = arith.constant 0 : index
    %c0_1 = arith.constant 0 : index
    %c0_2 = arith.constant 0 : index
    %0 = vector.load %arg2[%c0, %c0_0, %c0_1, %c0_2] : memref<1x1x4x456xf32, #tpu.memory_space<vmem>>, vector<1x1x4x456xf32>
    %1 = vector.shape_cast %0 : vector<1x1x4x456xf32> to vector<4x456xf32>
    %2 = vector.extract_strided_slice %1 {offsets = [0, 0], sizes = [4, 432], strides = [1, 1]} : vector<4x456xf32> to vector<4x432xf32>
    %3 = vector.extract_strided_slice %1 {offsets = [0, 1], sizes = [4, 432], strides = [1, 1]} : vector<4x456xf32> to vector<4x432xf32>
    %4 = vector.extract_strided_slice %1 {offsets = [0, 2], sizes = [4, 432], strides = [1, 1]} : vector<4x456xf32> to vector<4x432xf32>
    %c0_3 = arith.constant 0 : index
    %c0_4 = arith.constant 0 : index
    %c0_5 = arith.constant 0 : index
    %5 = vector.load %arg3[%c0_3, %c0_4, %c0_5] : memref<9x4x4xf32, #tpu.memory_space<vmem>>, vector<1x4x4xf32>
    %6 = vector.shape_cast %5 : vector<1x4x4xf32> to vector<4x4xf32>
    %cst = arith.constant dense<0.000000e+00> : vector<4x432xf32>
    %7 = tpu.matmul %6, %2, %cst {dimension_numbers = #tpu.dot_dimension_numbers<[1], [0], [0], [1], [0, 0, 1, 1], [], []>} : vector<4x4xf32>, vector<4x432xf32>, vector<4x432xf32> -> vector<4x432xf32>
    %c1 = arith.constant 1 : index
    %c0_6 = arith.constant 0 : index
    %c0_7 = arith.constant 0 : index
    %8 = vector.load %arg3[%c1, %c0_6, %c0_7] : memref<9x4x4xf32, #tpu.memory_space<vmem>>, vector<1x4x4xf32>
    %9 = vector.shape_cast %8 : vector<1x4x4xf32> to vector<4x4xf32>
    %cst_8 = arith.constant dense<0.000000e+00> : vector<4x432xf32>
    %10 = tpu.matmul %9, %3, %cst_8 {dimension_numbers = #tpu.dot_dimension_numbers<[1], [0], [0], [1], [0, 0, 1, 1], [], []>} : vector<4x4xf32>, vector<4x432xf32>, vector<4x432xf32> -> vector<4x432xf32>
    %11 = arith.addf %7, %10 : vector<4x432xf32>
    %c2 = arith.constant 2 : index
    %c0_9 = arith.constant 0 : index
    %c0_10 = arith.constant 0 : index
    %12 = vector.load %arg3[%c2, %c0_9, %c0_10] : memref<9x4x4xf32, #tpu.memory_space<vmem>>, vector<1x4x4xf32>
    %13 = vector.shape_cast %12 : vector<1x4x4xf32> to vector<4x4xf32>
    %cst_11 = arith.constant dense<0.000000e+00> : vector<4x432xf32>
    %14 = tpu.matmul %13, %4, %cst_11 {dimension_numbers = #tpu.dot_dimension_numbers<[1], [0], [0], [1], [0, 0, 1, 1], [], []>} : vector<4x4xf32>, vector<4x432xf32>, vector<4x432xf32> -> vector<4x432xf32>
    %15 = arith.addf %11, %14 : vector<4x432xf32>
    %16 = vector.extract_strided_slice %15 {offsets = [0, 0], sizes = [4, 384], strides = [1, 1]} : vector<4x432xf32> to vector<4x384xf32>
    %c3 = arith.constant 3 : index
    %c0_12 = arith.constant 0 : index
    %c0_13 = arith.constant 0 : index
    %17 = vector.load %arg3[%c3, %c0_12, %c0_13] : memref<9x4x4xf32, #tpu.memory_space<vmem>>, vector<1x4x4xf32>
    %18 = vector.shape_cast %17 : vector<1x4x4xf32> to vector<4x4xf32>
    %cst_14 = arith.constant dense<0.000000e+00> : vector<4x432xf32>
    %19 = tpu.matmul %18, %2, %cst_14 {dimension_numbers = #tpu.dot_dimension_numbers<[1], [0], [0], [1], [0, 0, 1, 1], [], []>} : vector<4x4xf32>, vector<4x432xf32>, vector<4x432xf32> -> vector<4x432xf32>
    %c4 = arith.constant 4 : index
    %c0_15 = arith.constant 0 : index
    %c0_16 = arith.constant 0 : index
    %20 = vector.load %arg3[%c4, %c0_15, %c0_16] : memref<9x4x4xf32, #tpu.memory_space<vmem>>, vector<1x4x4xf32>
    %21 = vector.shape_cast %20 : vector<1x4x4xf32> to vector<4x4xf32>
    %cst_17 = arith.constant dense<0.000000e+00> : vector<4x432xf32>
    %22 = tpu.matmul %21, %3, %cst_17 {dimension_numbers = #tpu.dot_dimension_numbers<[1], [0], [0], [1], [0, 0, 1, 1], [], []>} : vector<4x4xf32>, vector<4x432xf32>, vector<4x432xf32> -> vector<4x432xf32>
    %23 = arith.addf %19, %22 : vector<4x432xf32>
    %c5 = arith.constant 5 : index
    %c0_18 = arith.constant 0 : index
    %c0_19 = arith.constant 0 : index
    %24 = vector.load %arg3[%c5, %c0_18, %c0_19] : memref<9x4x4xf32, #tpu.memory_space<vmem>>, vector<1x4x4xf32>
    %25 = vector.shape_cast %24 : vector<1x4x4xf32> to vector<4x4xf32>
    %cst_20 = arith.constant dense<0.000000e+00> : vector<4x432xf32>
    %26 = tpu.matmul %25, %4, %cst_20 {dimension_numbers = #tpu.dot_dimension_numbers<[1], [0], [0], [1], [0, 0, 1, 1], [], []>} : vector<4x4xf32>, vector<4x432xf32>, vector<4x432xf32> -> vector<4x432xf32>
    %27 = arith.addf %23, %26 : vector<4x432xf32>
    %28 = vector.extract_strided_slice %27 {offsets = [0, 24], sizes = [4, 384], strides = [1, 1]} : vector<4x432xf32> to vector<4x384xf32>
    %29 = arith.addf %16, %28 : vector<4x384xf32>
    %c6 = arith.constant 6 : index
    %c0_21 = arith.constant 0 : index
    %c0_22 = arith.constant 0 : index
    %30 = vector.load %arg3[%c6, %c0_21, %c0_22] : memref<9x4x4xf32, #tpu.memory_space<vmem>>, vector<1x4x4xf32>
    %31 = vector.shape_cast %30 : vector<1x4x4xf32> to vector<4x4xf32>
    %cst_23 = arith.constant dense<0.000000e+00> : vector<4x432xf32>
    %32 = tpu.matmul %31, %2, %cst_23 {dimension_numbers = #tpu.dot_dimension_numbers<[1], [0], [0], [1], [0, 0, 1, 1], [], []>} : vector<4x4xf32>, vector<4x432xf32>, vector<4x432xf32> -> vector<4x432xf32>
    %c7 = arith.constant 7 : index
    %c0_24 = arith.constant 0 : index
    %c0_25 = arith.constant 0 : index
    %33 = vector.load %arg3[%c7, %c0_24, %c0_25] : memref<9x4x4xf32, #tpu.memory_space<vmem>>, vector<1x4x4xf32>
    %34 = vector.shape_cast %33 : vector<1x4x4xf32> to vector<4x4xf32>
    %cst_26 = arith.constant dense<0.000000e+00> : vector<4x432xf32>
    %35 = tpu.matmul %34, %3, %cst_26 {dimension_numbers = #tpu.dot_dimension_numbers<[1], [0], [0], [1], [0, 0, 1, 1], [], []>} : vector<4x4xf32>, vector<4x432xf32>, vector<4x432xf32> -> vector<4x432xf32>
    %36 = arith.addf %32, %35 : vector<4x432xf32>
    %c8 = arith.constant 8 : index
    %c0_27 = arith.constant 0 : index
    %c0_28 = arith.constant 0 : index
    %37 = vector.load %arg3[%c8, %c0_27, %c0_28] : memref<9x4x4xf32, #tpu.memory_space<vmem>>, vector<1x4x4xf32>
    %38 = vector.shape_cast %37 : vector<1x4x4xf32> to vector<4x4xf32>
    %cst_29 = arith.constant dense<0.000000e+00> : vector<4x432xf32>
    %39 = tpu.matmul %38, %4, %cst_29 {dimension_numbers = #tpu.dot_dimension_numbers<[1], [0], [0], [1], [0, 0, 1, 1], [], []>} : vector<4x4xf32>, vector<4x432xf32>, vector<4x432xf32> -> vector<4x432xf32>
    %40 = arith.addf %36, %39 : vector<4x432xf32>
    %41 = vector.extract_strided_slice %40 {offsets = [0, 48], sizes = [4, 384], strides = [1, 1]} : vector<4x432xf32> to vector<4x384xf32>
    %42 = arith.addf %29, %41 : vector<4x384xf32>
    %c0_30 = arith.constant 0 : index
    %c0_31 = arith.constant 0 : index
    %43 = vector.load %arg4[%c0_30, %c0_31] : memref<4x1xf32, #tpu.memory_space<vmem>>, vector<4x1xf32>
    %44 = vector.broadcast %43 : vector<4x1xf32> to vector<4x384xf32>
    %45 = arith.addf %42, %44 : vector<4x384xf32>
    %c0_32 = arith.constant 0 : index
    %c0_33 = arith.constant 0 : index
    %c0_34 = arith.constant 0 : index
    %46 = vector.load %arg5[%c0_32, %c0_33, %c0_34] : memref<1x4x384xf32, #tpu.memory_space<vmem>>, vector<1x4x384xf32>
    %47 = vector.shape_cast %46 : vector<1x4x384xf32> to vector<4x384xf32>
    %48 = vector.shape_cast %45 : vector<4x384xf32> to vector<1x4x384xf32>
    tpu.vector_store %arg5[%c0_32, %c0_33, %c0_34], %48 {strides = array<i32>} : memref<1x4x384xf32, #tpu.memory_space<vmem>>, vector<1x4x384xf32>,
    return
  }
  func.func @transform_0(%arg0: i32, %arg1: i32) -> (i32, i32, i32, i32) {
    %c0_i32 = arith.constant 0 : i32
    %c0_i32_0 = arith.constant 0 : i32
    %c0_i32_1 = arith.constant 0 : i32
    return %arg0, %arg1, %c0_i32, %c0_i32_0 : i32, i32, i32, i32
  }
  func.func @transform_1(%arg0: i32, %arg1: i32) -> (i32, i32, i32) {
    %c0_i32 = arith.constant 0 : i32
    %c0_i32_0 = arith.constant 0 : i32
    %c0_i32_1 = arith.constant 0 : i32
    %c0_i32_2 = arith.constant 0 : i32
    return %c0_i32, %c0_i32_0, %c0_i32_1 : i32, i32, i32
  }
  func.func @transform_2(%arg0: i32, %arg1: i32) -> (i32, i32) {
    %c0_i32 = arith.constant 0 : i32
    %c0_i32_0 = arith.constant 0 : i32
    %c0_i32_1 = arith.constant 0 : i32
    return %c0_i32, %c0_i32_0 : i32, i32
  }
  func.func @transform_3(%arg0: i32, %arg1: i32) -> (i32, i32, i32) {
    %c0_i32 = arith.constant 0 : i32
    %c0_i32_0 = arith.constant 0 : i32
    return %arg0, %c0_i32, %arg1 : i32, i32, i32
  }
}

</mosaic_0001>

<llo_original>
// kernel: rbx2sr_nores_forward.1
$region0: #{rbx2sr_nores_forward.1}
  #allocation0 [shape = 'u32[]', space=smem, size = 0x4, offset = 0x4, fixed_abs, tag = 'smem constant byte address 0x4 - core index']
  #allocation1 [shape = 'u32[144,128]{1,0:T(1,128)}', space=vmem, size = 0x12000, scoped, tag = 'internal scratch']
  %s0 = inlined_call_operand.vmem [shape: f32[2,1,4,456], index: 0, kind: input, shape index: {}]
  %s1 = inlined_call_operand.vmem [shape: f32[9,4,4], index: 1, kind: input, shape index: {}]
  %s2 = inlined_call_operand.vmem [shape: f32[4,1], index: 2, kind: input, shape index: {}]
  %s3 = inlined_call_operand.vmem [shape: f32[2,4,384], index: 3, kind: output, shape index: {}]
  %s4 = sld [smem:[#allocation0]]
  $region45: #{rbx2sr_nores_forward.1} parent=0
    _
  %s6 = ssub.s32 1, %s4
  %s7 = scalar_select 0, %s6, %s4
  loop: start=0, step=1, limit=4
  $region2: #{rbx2sr_nores_forward.1} parent=0 // loop_pre_header
    _
  $region3: #{rbx2sr_nores_forward.1} parent=0 // loop_header
    %s9 = sphi 0, %s13
    %p10 = scmp.ge.s32.totalorder %s9, 4
    %s16 = sphi 0, %s28
    %s17 = sphi 0, %s24
    %s18 = sphi 0, %s16
    %s19 = sphi 0, %s17
    %s20 = sphi 0, %s18
    %s21 = sphi 0, %s19
    %s33 = sphi 0, %s35
    %s36 = sphi 0, %s33
    %s37 = sphi 0, %s36
    %s53 = sphi 0, %s37
    %s57 = sphi 0, %s57
    %s59 = sphi 0, %s57
    %s60 = sphi 0, %s59
    %s74 = sphi 0, %s60
    %s78 = sphi 0, %s78
    %s80 = sphi 0, %s78
    %s81 = sphi 0, %s80
    %s95 = sphi 0, %s81
    %s103 = sphi 0, %s105
    %s106 = sphi 0, %s103
    %s107 = sphi 0, %s106
    %s123 = sphi 0, %s107
  $region4: #{rbx2sr_nores_forward.1} parent=0 // loop_header_branch
    %12 = sbr.rel (%p10) target = $region8
  $region5: #{rbx2sr_nores_forward.1} parent=0 // loop_body
    %s14 = ssub.s32 %s9, 1
    %s15 = ssub.s32 %s9, 2
    %s22 = sadd.s32 1, %s17
    %p23 = scmp.ge.s32.totalorder %s22, 1
    %s24 = scalar_select %p23, 0, %s22
    %s25 = sadd.s32 1, %s16
    %s26 = scalar_select %p23, %s25, %s16
    %p27 = scmp.ge.s32.totalorder %s26, 2
    %s28 = scalar_select %p27, 0, %s26
    %s29 = ssub.s32 %s16, %s28
    %s30 = ssub.s32 %s17, %s24
    %s31 = sor.u32 %s29, %s30
    %p32 = scmp.eq.s32.totalorder %s31, 0
    %s34 = sadd.s32 %s33, 1
    %s35 = scalar_select %p32, %s33, %s34
    %p38 = pneg %p32
    %p39 = scmp.eq.s32.totalorder %s9, 1
    %p40 = por %p38, %p39
    %p41 = scmp.ne.s32.totalorder %s33, %s36
    %p42 = scmp.eq.s32.totalorder %s9, 0
    %p43 = por %p41, %p42
    %p44 = scmp.ne.s32.totalorder %s33, %s36
    %p45 = scmp.eq.s32.totalorder %s14, 1
    %p46 = por %p44, %p45
    %p47 = scmp.ne.s32.totalorder %s36, %s37
    %p48 = scmp.eq.s32.totalorder %s14, 0
    %p49 = por %p47, %p48
    %p50 = scmp.ne.s32.totalorder %s36, %s37
    %p51 = scmp.eq.s32.totalorder %s15, 1
    %p52 = por %p50, %p51
    %p54 = scmp.ne.s32.totalorder %s37, %s53
    %p55 = scmp.eq.s32.totalorder %s15, 0
    %p56 = por %p54, %p55
    %s58 = sadd.s32 %s57, 1
    %p61 = scmp.eq.s32.totalorder %s9, 1
    %p62 = scmp.ne.s32.totalorder %s57, %s59
    %p63 = scmp.eq.s32.totalorder %s9, 0
    %p64 = por %p62, %p63
    %p65 = scmp.ne.s32.totalorder %s57, %s59
    %p66 = scmp.eq.s32.totalorder %s14, 1
    %p67 = por %p65, %p66
    %p68 = scmp.ne.s32.totalorder %s59, %s60
    %p69 = scmp.eq.s32.totalorder %s14, 0
    %p70 = por %p68, %p69
    %p71 = scmp.ne.s32.totalorder %s59, %s60
    %p72 = scmp.eq.s32.totalorder %s15, 1
    %p73 = por %p71, %p72
    %p75 = scmp.ne.s32.totalorder %s60, %s74
    %p76 = scmp.eq.s32.totalorder %s15, 0
    %p77 = por %p75, %p76
    %s79 = sadd.s32 %s78, 1
    %p82 = scmp.eq.s32.totalorder %s9, 1
    %p83 = scmp.ne.s32.totalorder %s78, %s80
    %p84 = scmp.eq.s32.totalorder %s9, 0
    %p85 = por %p83, %p84
    %p86 = scmp.ne.s32.totalorder %s78, %s80
    %p87 = scmp.eq.s32.totalorder %s14, 1
    %p88 = por %p86, %p87
    %p89 = scmp.ne.s32.totalorder %s80, %s81
    %p90 = scmp.eq.s32.totalorder %s14, 0
    %p91 = por %p89, %p90
    %p92 = scmp.ne.s32.totalorder %s80, %s81
    %p93 = scmp.eq.s32.totalorder %s15, 1
    %p94 = por %p92, %p93
    %p96 = scmp.ne.s32.totalorder %s81, %s95
    %p97 = scmp.eq.s32.totalorder %s15, 0
    %p98 = por %p96, %p97
    %s99 = ssub.s32 %s16, %s28
    %s100 = ssub.s32 %s17, %s24
    %s101 = sor.u32 %s99, %s100
    %p102 = scmp.eq.s32.totalorder %s101, 0
    %s104 = sadd.s32 %s103, 1
    %s105 = scalar_select %p102, %s103, %s104
    %p108 = pneg %p102
    %p109 = scmp.eq.s32.totalorder %s9, 1
    %p110 = por %p108, %p109
    %p111 = scmp.ne.s32.totalorder %s103, %s106
    %p112 = scmp.eq.s32.totalorder %s9, 0
    %p113 = por %p111, %p112
    %p114 = scmp.ne.s32.totalorder %s103, %s106
    %p115 = scmp.eq.s32.totalorder %s14, 1
    %p116 = por %p114, %p115
    %p117 = scmp.ne.s32.totalorder %s106, %s107
    %p118 = scmp.eq.s32.totalorder %s14, 0
    %p119 = por %p117, %p118
    %p120 = scmp.ne.s32.totalorder %s106, %s107
    %p121 = scmp.eq.s32.totalorder %s15, 1
    %p122 = por %p120, %p121
    %p124 = scmp.ne.s32.totalorder %s107, %s123
    %p125 = scmp.eq.s32.totalorder %s15, 0
    %p126 = por %p124, %p125
    %p127 = scmp.le.s32.totalorder 1, %s9
    %p128 = scmp.lt.s32.totalorder %s9, 3
    %p129 = pnand %p127, %p128
    %p130 = pneg %p129
    // Predicated region
    $region9: #{rbx2sr_nores_forward.1} parent=5 // pred_check
      _
    $region10: #{rbx2sr_nores_forward.1} parent=5 // pred_check_branch
      %132 = sbr.rel (%p129) target = $region12
    $region11: #{rbx2sr_nores_forward.1} parent=5 // pred_region
      %s133 = ssub.s32 %s9, 1
      // Predicated region
      $region13: #{rbx2sr_nores_forward.1} parent=11 // pred_check
        %p134 = pneg %p70
      $region14: #{rbx2sr_nores_forward.1} parent=11 // pred_check_branch
        %136 = sbr.rel (%p134) target = $region16
      $region15: #{rbx2sr_nores_forward.1} parent=11 // pred_region
        _
      $region16: #{rbx2sr_nores_forward.1} parent=11 // pred_fallthru
        _
      // Predicated region
      $region17: #{rbx2sr_nores_forward.1} parent=11 // pred_check
        %p137 = pneg %p91
      $region18: #{rbx2sr_nores_forward.1} parent=11 // pred_check_branch
        %139 = sbr.rel (%p137) target = $region20
      $region19: #{rbx2sr_nores_forward.1} parent=11 // pred_region
        _
      $region20: #{rbx2sr_nores_forward.1} parent=11 // pred_fallthru
        _
    $region12: #{rbx2sr_nores_forward.1} parent=5 // pred_fallthru
      _
    %p140 = scmp.lt.s32.totalorder %s9, 2
    // Predicated region
    $region21: #{rbx2sr_nores_forward.1} parent=5 // pred_check
      %p141 = pneg %p140
    $region22: #{rbx2sr_nores_forward.1} parent=5 // pred_check_branch
      %143 = sbr.rel (%p141) target = $region24
    $region23: #{rbx2sr_nores_forward.1} parent=5 // pred_region
      // Predicated region
      $region25: #{rbx2sr_nores_forward.1} parent=23 // pred_check
        %p144 = pneg %p43
      $region26: #{rbx2sr_nores_forward.1} parent=23 // pred_check_branch
        %146 = sbr.rel (%p144) target = $region28
      $region27: #{rbx2sr_nores_forward.1} parent=23 // pred_region
        %p147 = scmp.lt.s32.totalorder %s16, 1
        %s148 = scalar_select %p147, %s16, 1
        %p149 = scmp.lt.s32.totalorder %s17, 0
        %s150 = scalar_select %p149, %s17, 0
        %s151 = smul.addr %s150, 4
        %s152 = smul.addr %s148, 4
        %s153 = sadd.s32 %s151, %s152
        %s154 = smul.addr %s153, 4
        %s155 = scalar_lea.vmem %s0, %s154
      $region28: #{rbx2sr_nores_forward.1} parent=23 // pred_fallthru
        _
    $region24: #{rbx2sr_nores_forward.1} parent=5 // pred_fallthru
      _
    %p156 = scmp.le.s32.totalorder 1, %s9
    %p157 = scmp.lt.s32.totalorder %s9, 3
    %p158 = pnand %p156, %p157
    %p159 = pneg %p158
    // Predicated region
    $region29: #{rbx2sr_nores_forward.1} parent=5 // pred_check
      _
    $region30: #{rbx2sr_nores_forward.1} parent=5 // pred_check_branch
      %161 = sbr.rel (%p158) target = $region32
    $region31: #{rbx2sr_nores_forward.1} parent=5 // pred_region
      %s162 = ssub.s32 %s9, 1
      %p163 = scmp.lt.s32.totalorder %s18, 1
      %s164 = scalar_select %p163, %s18, 1
      %p165 = scmp.lt.s32.totalorder %s19, 0
      %s166 = scalar_select %p165, %s19, 0
      %s167 = smul.addr %s166, 4
      %s168 = smul.addr %s164, 4
      %s169 = sadd.s32 %s167, %s168
      %s170 = smul.addr %s169, 4
      %s171 = scalar_lea.vmem %s0, %s170
      %p172 = pneg %p49
      %p173 = pneg %p46
      %p174 = pneg %p70
      %p175 = pneg %p67
      %p176 = pneg %p91
      %p177 = pneg %p88
      %p178 = pneg %p119
      %p179 = pneg %p116
      %s180 = smul.u32 3, %s19
      %p181 = scmp.lt.s32.totalorder %s18, 1
      %s182 = scalar_select %p181, %s18, 1
      %p183 = scmp.lt.s32.totalorder %s180, 2
      %s184 = scalar_select %p183, %s180, 2
      %s185 = smul.addr %s182, 3
      %s186 = sadd.s32 %s184, %s185
      %s187 = smul.addr %s186, 4
      %s188 = scalar_lea.vmem %s3, %s187
      %p189 = scmp.lt.s32.totalorder %s18, 1
      %s190 = scalar_select %p189, %s18, 1
      %p191 = scmp.lt.s32.totalorder %s19, 0
      %s192 = scalar_select %p191, %s19, 0
      %s193 = smul.addr %s192, 4
      %s194 = smul.addr %s190, 4
      %s195 = sadd.s32 %s193, %s194
      %s196 = smul.addr %s195, 4
      %s197 = scalar_lea.vmem %s0, %s196
      %s198 = smul.u32 3, %s19
      %p199 = scmp.lt.s32.totalorder %s18, 1
      %s200 = scalar_select %p199, %s18, 1
      %p201 = scmp.lt.s32.totalorder %s198, 2
      %s202 = scalar_select %p201, %s198, 2
      %s203 = smul.addr %s200, 3
      %s204 = sadd.s32 %s202, %s203
      %s205 = smul.addr %s204, 4
      %s206 = scalar_lea.vmem %s3, %s205
      %s207 = smul.u32 3, %s19
      %v208 = vld [vmem:[%s197] sm:$0xff]
      %v209 = vld [vmem:[%s197 + $0x8] sm:$0xff]
      %v210 = vld [vmem:[%s1] sm:$0xf]
      %s211 = scalar_lea.vmem %s1, 4
      %v212 = vld [vmem:[%s211] sm:$0xf]
      %v215 = vcombine.high %v208, %v208
      %v216 = vcombine.high %v209, %v209
      %217 = vrot.lane.b32.xlu0 %v208, 127
      %v218 = vpop.permute.xlu0 %217
      %219 = vrot.lane.b32.xlu0 %v215, 127
      %v220 = vpop.permute.xlu0 %219
      %221 = vrot.lane.b32.xlu0 %v209, 127
      %v222 = vpop.permute.xlu0 %221
      %223 = vrot.lane.b32.xlu0 %v216, 127
      %v224 = vpop.permute.xlu0 %223
      %vm225 = vcmask 1039360
      %v226 = vsel %vm225, %v218, %v220
      %v227 = vsel %vm225, %v220, %v222
      %v228 = vsel %vm225, %v222, %v224
      %vm229 = vcmask 31744
      %v231 = vsel %vm229, %v212, 0
      %vm233 = vcmask 1043456
      %v234 = vsel %vm233, %v226, 0
      %v236 = vsel %vm233, %v227, 0
      %v238 = vsel %vm233, %v228, 0
      %v240 = vsel %vm233, %v224, 0
      %242 = vmatprep.subr.mxu0 %v236
      %243 = vmatpush1.msra.mxu0 %v234
      %244 = vmatprep.subr.mxu0 0.0
      %245 = vmatpush1.msra.mxu0 0.0
      %246 = vmatprep.subr.mxu0 0.0
      %247 = vmatpush1.msra.mxu0 0.0
      %248 = vmatprep.subr.mxu0 0.0
      %249 = vmatpush1.msra.mxu0 0.0
      %250 = vmatprep.subr.mxu0 0.0
      %251 = vmatpush1.msra.mxu0 0.0
      %252 = vmatprep.subr.mxu0 0.0
      %253 = vmatpush1.msra.mxu0 0.0
      %254 = vmatprep.subr.mxu0 0.0
      %255 = vmatpush1.msra.mxu0 0.0
      %256 = vmatprep.subr.mxu0 0.0
      %257 = vmatpush1.msra.mxu0 0.0
      %258 = vmatprep.subr.mxu0 0.0
      %259 = vmatpush1.msra.mxu0 0.0
      %260 = vmatprep.subr.mxu0 0.0
      %261 = vmatpush1.msra.mxu0 0.0
      %262 = vmatprep.subr.mxu0 0.0
      %263 = vmatpush1.msra.mxu0 0.0
      %264 = vmatprep.subr.mxu0 0.0
      %265 = vmatpush1.msra.mxu0 0.0
      %266 = vmatprep.subr.mxu0 0.0
      %267 = vmatpush1.msra.mxu0 0.0
      %268 = vmatprep.subr.mxu0 0.0
      %269 = vmatpush1.msra.mxu0 0.0
      %270 = vmatprep.subr.mxu0 0.0
      %271 = vmatpush1.msra.mxu0 0.0
      %272 = vmatprep.subr.mxu0 0.0
      %273 = vmatpush1.msra.mxu0 0.0
      %274 = vmatprep.subr.mxu0 0.0
      %275 = vmatpush1.msra.mxu0 0.0
      %276 = vmatprep.subr.mxu0 0.0
      %277 = vmatpush1.msra.mxu0 0.0
      %278 = vmatprep.subr.mxu0 0.0
      %279 = vmatpush1.msra.mxu0 0.0
      %280 = vmatprep.subr.mxu0 0.0
      %281 = vmatpush1.msra.mxu0 0.0
      %282 = vmatprep.subr.mxu0 0.0
      %283 = vmatpush1.msra.mxu0 0.0
      %284 = vmatprep.subr.mxu0 0.0
      %285 = vmatpush1.msra.mxu0 0.0
      %286 = vmatprep.subr.mxu0 0.0
      %287 = vmatpush1.msra.mxu0 0.0
      %288 = vmatprep.subr.mxu0 0.0
      %289 = vmatpush1.msra.mxu0 0.0
      %290 = vmatprep.subr.mxu0 0.0
      %291 = vmatpush1.msra.mxu0 0.0
      %292 = vmatprep.subr.mxu0 0.0
      %293 = vmatpush1.msra.mxu0 0.0
      %294 = vmatprep.subr.mxu0 0.0
      %295 = vmatpush1.msra.mxu0 0.0
      %296 = vmatprep.subr.mxu0 0.0
      %297 = vmatpush1.msra.mxu0 0.0
      %298 = vmatprep.subr.mxu0 0.0
      %299 = vmatpush1.msra.mxu0 0.0
      %300 = vmatprep.subr.mxu0 0.0
      %301 = vmatpush1.msra.mxu0 0.0
      %302 = vmatprep.subr.mxu0 0.0
      %303 = vmatpush1.msra.mxu0 0.0
      %304 = vmatprep.subr.mxu0 0.0
      %305 = vmatpush1.msra.mxu0 0.0
      %306 = vmatprep.mubr.f32.mxu0 0.0
      %307 = vmatmul.mubr.f32.gmra.mrb[0].mxu0 %v231
      %v308 = vpop.f32.mrb[0].mxu0
      %v309 = vadd.f32 0.0, %v308
      %v310 = vpop.f32.mrb[0].mxu0
      %v311 = vadd.f32 0.0, %v310
      %312 = vdwg.mxu0
      %313 = vmatprep.subr.mxu0 %v240
      %314 = vmatpush1.msra.mxu0 %v238
      %315 = vmatprep.subr.mxu0 0.0
      %316 = vmatpush1.msra.mxu0 0.0
      %317 = vmatprep.subr.mxu0 0.0
      %318 = vmatpush1.msra.mxu0 0.0
      %319 = vmatprep.subr.mxu0 0.0
      %320 = vmatpush1.msra.mxu0 0.0
      %321 = vmatprep.subr.mxu0 0.0
      %322 = vmatpush1.msra.mxu0 0.0
      %323 = vmatprep.subr.mxu0 0.0
      %324 = vmatpush1.msra.mxu0 0.0
      %325 = vmatprep.subr.mxu0 0.0
      %326 = vmatpush1.msra.mxu0 0.0
      %327 = vmatprep.subr.mxu0 0.0
      %328 = vmatpush1.msra.mxu0 0.0
      %329 = vmatprep.subr.mxu0 0.0
      %330 = vmatpush1.msra.mxu0 0.0
      %331 = vmatprep.subr.mxu0 0.0
      %332 = vmatpush1.msra.mxu0 0.0
      %333 = vmatprep.subr.mxu0 0.0
      %334 = vmatpush1.msra.mxu0 0.0
      %335 = vmatprep.subr.mxu0 0.0
      %336 = vmatpush1.msra.mxu0 0.0
      %337 = vmatprep.subr.mxu0 0.0
      %338 = vmatpush1.msra.mxu0 0.0
      %339 = vmatprep.subr.mxu0 0.0
      %340 = vmatpush1.msra.mxu0 0.0
      %341 = vmatprep.subr.mxu0 0.0
      %342 = vmatpush1.msra.mxu0 0.0
      %343 = vmatprep.subr.mxu0 0.0
      %344 = vmatpush1.msra.mxu0 0.0
      %345 = vmatprep.subr.mxu0 0.0
      %346 = vmatpush1.msra.mxu0 0.0
      %347 = vmatprep.subr.mxu0 0.0
      %348 = vmatpush1.msra.mxu0 0.0
      %349 = vmatprep.subr.mxu0 0.0
      %350 = vmatpush1.msra.mxu0 0.0
      %351 = vmatprep.subr.mxu0 0.0
      %352 = vmatpush1.msra.mxu0 0.0
      %353 = vmatprep.subr.mxu0 0.0
      %354 = vmatpush1.msra.mxu0 0.0
      %355 = vmatprep.subr.mxu0 0.0
      %356 = vmatpush1.msra.mxu0 0.0
      %357 = vmatprep.subr.mxu0 0.0
      %358 = vmatpush1.msra.mxu0 0.0
      %359 = vmatprep.subr.mxu0 0.0
      %360 = vmatpush1.msra.mxu0 0.0
      %361 = vmatprep.subr.mxu0 0.0
      %362 = vmatpush1.msra.mxu0 0.0
      %363 = vmatprep.subr.mxu0 0.0
      %364 = vmatpush1.msra.mxu0 0.0
      %365 = vmatprep.subr.mxu0 0.0
      %366 = vmatpush1.msra.mxu0 0.0
      %367 = vmatprep.subr.mxu0 0.0
      %368 = vmatpush1.msra.mxu0 0.0
      %369 = vmatprep.subr.mxu0 0.0
      %370 = vmatpush1.msra.mxu0 0.0
      %371 = vmatprep.subr.mxu0 0.0
      %372 = vmatpush1.msra.mxu0 0.0
      %373 = vmatprep.subr.mxu0 0.0
      %374 = vmatpush1.msra.mxu0 0.0
      %375 = vmatprep.subr.mxu0 0.0
      %376 = vmatpush1.msra.mxu0 0.0
      %377 = vmatprep.mubr.f32.mxu0 0.0
      %378 = vmatmul.mubr.f32.gmra.mrb[0].mxu0 %v231
      %v379 = vpop.f32.mrb[0].mxu0
      %v380 = vadd.f32 0.0, %v379
      %v381 = vpop.f32.mrb[0].mxu0
      %382 = vdwg.mxu0
      %v384 = vsel %vm229, %v210, 0
      %v386 = vsel %vm233, %v208, 0
      %v388 = vsel %vm233, %v215, 0
      %v390 = vsel %vm233, %v209, 0
      %v392 = vsel %vm233, %v216, 0
      %394 = vmatprep.subr.mxu0 %v388
      %395 = vmatpush1.msra.mxu0 %v386
      %396 = vmatprep.subr.mxu0 0.0
      %397 = vmatpush1.msra.mxu0 0.0
      %398 = vmatprep.subr.mxu0 0.0
      %399 = vmatpush1.msra.mxu0 0.0
      %400 = vmatprep.subr.mxu0 0.0
      %401 = vmatpush1.msra.mxu0 0.0
      %402 = vmatprep.subr.mxu0 0.0
      %403 = vmatpush1.msra.mxu0 0.0
      %404 = vmatprep.subr.mxu0 0.0
      %405 = vmatpush1.msra.mxu0 0.0
      %406 = vmatprep.subr.mxu0 0.0
      %407 = vmatpush1.msra.mxu0 0.0
      %408 = vmatprep.subr.mxu0 0.0
      %409 = vmatpush1.msra.mxu0 0.0
      %410 = vmatprep.subr.mxu0 0.0
      %411 = vmatpush1.msra.mxu0 0.0
      %412 = vmatprep.subr.mxu0 0.0
      %413 = vmatpush1.msra.mxu0 0.0
      %414 = vmatprep.subr.mxu0 0.0
      %415 = vmatpush1.msra.mxu0 0.0
      %416 = vmatprep.subr.mxu0 0.0
      %417 = vmatpush1.msra.mxu0 0.0
      %418 = vmatprep.subr.mxu0 0.0
      %419 = vmatpush1.msra.mxu0 0.0
      %420 = vmatprep.subr.mxu0 0.0
      %421 = vmatpush1.msra.mxu0 0.0
      %422 = vmatprep.subr.mxu0 0.0
      %423 = vmatpush1.msra.mxu0 0.0
      %424 = vmatprep.subr.mxu0 0.0
      %425 = vmatpush1.msra.mxu0 0.0
      %426 = vmatprep.subr.mxu0 0.0
      %427 = vmatpush1.msra.mxu0 0.0
      %428 = vmatprep.subr.mxu0 0.0
      %429 = vmatpush1.msra.mxu0 0.0
      %430 = vmatprep.subr.mxu0 0.0
      %431 = vmatpush1.msra.mxu0 0.0
      %432 = vmatprep.subr.mxu0 0.0
      %433 = vmatpush1.msra.mxu0 0.0
      %434 = vmatprep.subr.mxu0 0.0
      %435 = vmatpush1.msra.mxu0 0.0
      %436 = vmatprep.subr.mxu0 0.0
      %437 = vmatpush1.msra.mxu0 0.0
      %438 = vmatprep.subr.mxu0 0.0
      %439 = vmatpush1.msra.mxu0 0.0
      %440 = vmatprep.subr.mxu0 0.0
      %441 = vmatpush1.msra.mxu0 0.0
      %442 = vmatprep.subr.mxu0 0.0
      %443 = vmatpush1.msra.mxu0 0.0
      %444 = vmatprep.subr.mxu0 0.0
      %445 = vmatpush1.msra.mxu0 0.0
      %446 = vmatprep.subr.mxu0 0.0
      %447 = vmatpush1.msra.mxu0 0.0
      %448 = vmatprep.subr.mxu0 0.0
      %449 = vmatpush1.msra.mxu0 0.0
      %450 = vmatprep.subr.mxu0 0.0
      %451 = vmatpush1.msra.mxu0 0.0
      %452 = vmatprep.subr.mxu0 0.0
      %453 = vmatpush1.msra.mxu0 0.0
      %454 = vmatprep.subr.mxu0 0.0
      %455 = vmatpush1.msra.mxu0 0.0
      %456 = vmatprep.subr.mxu0 0.0
      %457 = vmatpush1.msra.mxu0 0.0
      %458 = vmatprep.mubr.f32.mxu0 0.0
      %459 = vmatmul.mubr.f32.gmra.mrb[0].mxu0 %v384
      %v460 = vpop.f32.mrb[0].mxu0
      %v461 = vadd.f32 %v309, %v460
      %v462 = vpop.f32.mrb[0].mxu0
      %v463 = vadd.f32 %v311, %v462
      %464 = vdwg.mxu0
      %465 = vmatprep.subr.mxu0 %v392
      %466 = vmatpush1.msra.mxu0 %v390
      %467 = vmatprep.subr.mxu0 0.0
      %468 = vmatpush1.msra.mxu0 0.0
      %469 = vmatprep.subr.mxu0 0.0
      %470 = vmatpush1.msra.mxu0 0.0
      %471 = vmatprep.subr.mxu0 0.0
      %472 = vmatpush1.msra.mxu0 0.0
      %473 = vmatprep.subr.mxu0 0.0
      %474 = vmatpush1.msra.mxu0 0.0
      %475 = vmatprep.subr.mxu0 0.0
      %476 = vmatpush1.msra.mxu0 0.0
      %477 = vmatprep.subr.mxu0 0.0
      %478 = vmatpush1.msra.mxu0 0.0
      %479 = vmatprep.subr.mxu0 0.0
      %480 = vmatpush1.msra.mxu0 0.0
      %481 = vmatprep.subr.mxu0 0.0
      %482 = vmatpush1.msra.mxu0 0.0
      %483 = vmatprep.subr.mxu0 0.0
      %484 = vmatpush1.msra.mxu0 0.0
      %485 = vmatprep.subr.mxu0 0.0
      %486 = vmatpush1.msra.mxu0 0.0
      %487 = vmatprep.subr.mxu0 0.0
      %488 = vmatpush1.msra.mxu0 0.0
      %489 = vmatprep.subr.mxu0 0.0
      %490 = vmatpush1.msra.mxu0 0.0
      %491 = vmatprep.subr.mxu0 0.0
      %492 = vmatpush1.msra.mxu0 0.0
      %493 = vmatprep.subr.mxu0 0.0
      %494 = vmatpush1.msra.mxu0 0.0
      %495 = vmatprep.subr.mxu0 0.0
      %496 = vmatpush1.msra.mxu0 0.0
      %497 = vmatprep.subr.mxu0 0.0
      %498 = vmatpush1.msra.mxu0 0.0
      %499 = vmatprep.subr.mxu0 0.0
      %500 = vmatpush1.msra.mxu0 0.0
      %501 = vmatprep.subr.mxu0 0.0
      %502 = vmatpush1.msra.mxu0 0.0
      %503 = vmatprep.subr.mxu0 0.0
      %504 = vmatpush1.msra.mxu0 0.0
      %505 = vmatprep.subr.mxu0 0.0
      %506 = vmatpush1.msra.mxu0 0.0
      %507 = vmatprep.subr.mxu0 0.0
      %508 = vmatpush1.msra.mxu0 0.0
      %509 = vmatprep.subr.mxu0 0.0
      %510 = vmatpush1.msra.mxu0 0.0
      %511 = vmatprep.subr.mxu0 0.0
      %512 = vmatpush1.msra.mxu0 0.0
      %513 = vmatprep.subr.mxu0 0.0
      %514 = vmatpush1.msra.mxu0 0.0
      %515 = vmatprep.subr.mxu0 0.0
      %516 = vmatpush1.msra.mxu0 0.0
      %517 = vmatprep.subr.mxu0 0.0
      %518 = vmatpush1.msra.mxu0 0.0
      %519 = vmatprep.subr.mxu0 0.0
      %520 = vmatpush1.msra.mxu0 0.0
      %521 = vmatprep.subr.mxu0 0.0
      %522 = vmatpush1.msra.mxu0 0.0
      %523 = vmatprep.subr.mxu0 0.0
      %524 = vmatpush1.msra.mxu0 0.0
      %525 = vmatprep.subr.mxu0 0.0
      %526 = vmatpush1.msra.mxu0 0.0
      %527 = vmatprep.subr.mxu0 0.0
      %528 = vmatpush1.msra.mxu0 0.0
      %529 = vmatprep.mubr.f32.mxu0 0.0
      %530 = vmatmul.mubr.f32.gmra.mrb[0].mxu0 %v384
      %v531 = vpop.f32.mrb[0].mxu0
      %v532 = vadd.f32 %v380, %v531
      %v533 = vpop.f32.mrb[0].mxu0
      %534 = vdwg.mxu0
      %s535 = scalar_lea.vmem %s1, 8
      %v536 = vld [vmem:[%s535] sm:$0xf]
      %537 = vrot.lane.b32.xlu0 %v208, 126
      %v538 = vpop.permute.xlu0 %537
      %539 = vrot.lane.b32.xlu0 %v215, 126
      %v540 = vpop.permute.xlu0 %539
      %541 = vrot.lane.b32.xlu0 %v209, 126
      %v542 = vpop.permute.xlu0 %541
      %543 = vrot.lane.b32.xlu0 %v216, 126
      %v544 = vpop.permute.xlu0 %543
      %vm545 = vcmask 1031168
      %v546 = vsel %vm545, %v538, %v540
      %v547 = vsel %vm545, %v540, %v542
      %v548 = vsel %vm545, %v542, %v544
      %v550 = vsel %vm229, %v536, 0
      %v552 = vsel %vm233, %v546, 0
      %v554 = vsel %vm233, %v547, 0
      %v556 = vsel %vm233, %v548, 0
      %v558 = vsel %vm233, %v544, 0
      %560 = vmatprep.subr.mxu0 %v554
      %561 = vmatpush1.msra.mxu0 %v552
      %562 = vmatprep.subr.mxu0 0.0
      %563 = vmatpush1.msra.mxu0 0.0
      %564 = vmatprep.subr.mxu0 0.0
      %565 = vmatpush1.msra.mxu0 0.0
      %566 = vmatprep.subr.mxu0 0.0
      %567 = vmatpush1.msra.mxu0 0.0
      %568 = vmatprep.subr.mxu0 0.0
      %569 = vmatpush1.msra.mxu0 0.0
      %570 = vmatprep.subr.mxu0 0.0
      %571 = vmatpush1.msra.mxu0 0.0
      %572 = vmatprep.subr.mxu0 0.0
      %573 = vmatpush1.msra.mxu0 0.0
      %574 = vmatprep.subr.mxu0 0.0
      %575 = vmatpush1.msra.mxu0 0.0
      %576 = vmatprep.subr.mxu0 0.0
      %577 = vmatpush1.msra.mxu0 0.0
      %578 = vmatprep.subr.mxu0 0.0
      %579 = vmatpush1.msra.mxu0 0.0
      %580 = vmatprep.subr.mxu0 0.0
      %581 = vmatpush1.msra.mxu0 0.0
      %582 = vmatprep.subr.mxu0 0.0
      %583 = vmatpush1.msra.mxu0 0.0
      %584 = vmatprep.subr.mxu0 0.0
      %585 = vmatpush1.msra.mxu0 0.0
      %586 = vmatprep.subr.mxu0 0.0
      %587 = vmatpush1.msra.mxu0 0.0
      %588 = vmatprep.subr.mxu0 0.0
      %589 = vmatpush1.msra.mxu0 0.0
      %590 = vmatprep.subr.mxu0 0.0
      %591 = vmatpush1.msra.mxu0 0.0
      %592 = vmatprep.subr.mxu0 0.0
      %593 = vmatpush1.msra.mxu0 0.0
      %594 = vmatprep.subr.mxu0 0.0
      %595 = vmatpush1.msra.mxu0 0.0
      %596 = vmatprep.subr.mxu0 0.0
      %597 = vmatpush1.msra.mxu0 0.0
      %598 = vmatprep.subr.mxu0 0.0
      %599 = vmatpush1.msra.mxu0 0.0
      %600 = vmatprep.subr.mxu0 0.0
      %601 = vmatpush1.msra.mxu0 0.0
      %602 = vmatprep.subr.mxu0 0.0
      %603 = vmatpush1.msra.mxu0 0.0
      %604 = vmatprep.subr.mxu0 0.0
      %605 = vmatpush1.msra.mxu0 0.0
      %606 = vmatprep.subr.mxu0 0.0
      %607 = vmatpush1.msra.mxu0 0.0
      %608 = vmatprep.subr.mxu0 0.0
      %609 = vmatpush1.msra.mxu0 0.0
      %610 = vmatprep.subr.mxu0 0.0
      %611 = vmatpush1.msra.mxu0 0.0
      %612 = vmatprep.subr.mxu0 0.0
      %613 = vmatpush1.msra.mxu0 0.0
      %614 = vmatprep.subr.mxu0 0.0
      %615 = vmatpush1.msra.mxu0 0.0
      %616 = vmatprep.subr.mxu0 0.0
      %617 = vmatpush1.msra.mxu0 0.0
      %618 = vmatprep.subr.mxu0 0.0
      %619 = vmatpush1.msra.mxu0 0.0
      %620 = vmatprep.subr.mxu0 0.0
      %621 = vmatpush1.msra.mxu0 0.0
      %622 = vmatprep.subr.mxu0 0.0
      %623 = vmatpush1.msra.mxu0 0.0
      %624 = vmatprep.mubr.f32.mxu0 0.0
      %625 = vmatmul.mubr.f32.gmra.mrb[0].mxu0 %v550
      %v626 = vpop.f32.mrb[0].mxu0
      %v627 = vadd.f32 0.0, %v626
      %v628 = vpop.f32.mrb[0].mxu0
      %v629 = vadd.f32 0.0, %v628
      %630 = vdwg.mxu0
      %631 = vmatprep.subr.mxu0 %v558
      %632 = vmatpush1.msra.mxu0 %v556
      %633 = vmatprep.subr.mxu0 0.0
      %634 = vmatpush1.msra.mxu0 0.0
      %635 = vmatprep.subr.mxu0 0.0
      %636 = vmatpush1.msra.mxu0 0.0
      %637 = vmatprep.subr.mxu0 0.0
      %638 = vmatpush1.msra.mxu0 0.0
      %639 = vmatprep.subr.mxu0 0.0
      %640 = vmatpush1.msra.mxu0 0.0
      %641 = vmatprep.subr.mxu0 0.0
      %642 = vmatpush1.msra.mxu0 0.0
      %643 = vmatprep.subr.mxu0 0.0
      %644 = vmatpush1.msra.mxu0 0.0
      %645 = vmatprep.subr.mxu0 0.0
      %646 = vmatpush1.msra.mxu0 0.0
      %647 = vmatprep.subr.mxu0 0.0
      %648 = vmatpush1.msra.mxu0 0.0
      %649 = vmatprep.subr.mxu0 0.0
      %650 = vmatpush1.msra.mxu0 0.0
      %651 = vmatprep.subr.mxu0 0.0
      %652 = vmatpush1.msra.mxu0 0.0
      %653 = vmatprep.subr.mxu0 0.0
      %654 = vmatpush1.msra.mxu0 0.0
      %655 = vmatprep.subr.mxu0 0.0
      %656 = vmatpush1.msra.mxu0 0.0
      %657 = vmatprep.subr.mxu0 0.0
      %658 = vmatpush1.msra.mxu0 0.0
      %659 = vmatprep.subr.mxu0 0.0
      %660 = vmatpush1.msra.mxu0 0.0
      %661 = vmatprep.subr.mxu0 0.0
      %662 = vmatpush1.msra.mxu0 0.0
      %663 = vmatprep.subr.mxu0 0.0
      %664 = vmatpush1.msra.mxu0 0.0
      %665 = vmatprep.subr.mxu0 0.0
      %666 = vmatpush1.msra.mxu0 0.0
      %667 = vmatprep.subr.mxu0 0.0
      %668 = vmatpush1.msra.mxu0 0.0
      %669 = vmatprep.subr.mxu0 0.0
      %670 = vmatpush1.msra.mxu0 0.0
      %671 = vmatprep.subr.mxu0 0.0
      %672 = vmatpush1.msra.mxu0 0.0
      %673 = vmatprep.subr.mxu0 0.0
      %674 = vmatpush1.msra.mxu0 0.0
      %675 = vmatprep.subr.mxu0 0.0
      %676 = vmatpush1.msra.mxu0 0.0
      %677 = vmatprep.subr.mxu0 0.0
      %678 = vmatpush1.msra.mxu0 0.0
      %679 = vmatprep.subr.mxu0 0.0
      %680 = vmatpush1.msra.mxu0 0.0
      %681 = vmatprep.subr.mxu0 0.0
      %682 = vmatpush1.msra.mxu0 0.0
      %683 = vmatprep.subr.mxu0 0.0
      %684 = vmatpush1.msra.mxu0 0.0
      %685 = vmatprep.subr.mxu0 0.0
      %686 = vmatpush1.msra.mxu0 0.0
      %687 = vmatprep.subr.mxu0 0.0
      %688 = vmatpush1.msra.mxu0 0.0
      %689 = vmatprep.subr.mxu0 0.0
      %690 = vmatpush1.msra.mxu0 0.0
      %691 = vmatprep.subr.mxu0 0.0
      %692 = vmatpush1.msra.mxu0 0.0
      %693 = vmatprep.subr.mxu0 0.0
      %694 = vmatpush1.msra.mxu0 0.0
      %695 = vmatprep.mubr.f32.mxu0 0.0
      %696 = vmatmul.mubr.f32.gmra.mrb[0].mxu0 %v550
      %v697 = vpop.f32.mrb[0].mxu0
      %v698 = vadd.f32 0.0, %v697
      %v699 = vpop.f32.mrb[0].mxu0
      %700 = vdwg.mxu0
      %v701 = vadd.f32 %v461, %v627
      %v702 = vadd.f32 %v463, %v629
      %v703 = vadd.f32 %v532, %v698
      %s704 = scalar_lea.vmem %s1, 12
      %v705 = vld [vmem:[%s704] sm:$0xf]
      %s706 = scalar_lea.vmem %s1, 16
      %v707 = vld [vmem:[%s706] sm:$0xf]
      %v709 = vsel %vm229, %v707, 0
      %711 = vmatprep.subr.mxu0 %v236
      %712 = vmatpush1.msra.mxu0 %v234
      %713 = vmatprep.subr.mxu0 0.0
      %714 = vmatpush1.msra.mxu0 0.0
      %715 = vmatprep.subr.mxu0 0.0
      %716 = vmatpush1.msra.mxu0 0.0
      %717 = vmatprep.subr.mxu0 0.0
      %718 = vmatpush1.msra.mxu0 0.0
      %719 = vmatprep.subr.mxu0 0.0
      %720 = vmatpush1.msra.mxu0 0.0
      %721 = vmatprep.subr.mxu0 0.0
      %722 = vmatpush1.msra.mxu0 0.0
      %723 = vmatprep.subr.mxu0 0.0
      %724 = vmatpush1.msra.mxu0 0.0
      %725 = vmatprep.subr.mxu0 0.0
      %726 = vmatpush1.msra.mxu0 0.0
      %727 = vmatprep.subr.mxu0 0.0
      %728 = vmatpush1.msra.mxu0 0.0
      %729 = vmatprep.subr.mxu0 0.0
      %730 = vmatpush1.msra.mxu0 0.0
      %731 = vmatprep.subr.mxu0 0.0
      %732 = vmatpush1.msra.mxu0 0.0
      %733 = vmatprep.subr.mxu0 0.0
      %734 = vmatpush1.msra.mxu0 0.0
      %735 = vmatprep.subr.mxu0 0.0
      %736 = vmatpush1.msra.mxu0 0.0
      %737 = vmatprep.subr.mxu0 0.0
      %738 = vmatpush1.msra.mxu0 0.0
      %739 = vmatprep.subr.mxu0 0.0
      %740 = vmatpush1.msra.mxu0 0.0
      %741 = vmatprep.subr.mxu0 0.0
      %742 = vmatpush1.msra.mxu0 0.0
      %743 = vmatprep.subr.mxu0 0.0
      %744 = vmatpush1.msra.mxu0 0.0
      %745 = vmatprep.subr.mxu0 0.0
      %746 = vmatpush1.msra.mxu0 0.0
      %747 = vmatprep.subr.mxu0 0.0
      %748 = vmatpush1.msra.mxu0 0.0
      %749 = vmatprep.subr.mxu0 0.0
      %750 = vmatpush1.msra.mxu0 0.0
      %751 = vmatprep.subr.mxu0 0.0
      %752 = vmatpush1.msra.mxu0 0.0
      %753 = vmatprep.subr.mxu0 0.0
      %754 = vmatpush1.msra.mxu0 0.0
      %755 = vmatprep.subr.mxu0 0.0
      %756 = vmatpush1.msra.mxu0 0.0
      %757 = vmatprep.subr.mxu0 0.0
      %758 = vmatpush1.msra.mxu0 0.0
      %759 = vmatprep.subr.mxu0 0.0
      %760 = vmatpush1.msra.mxu0 0.0
      %761 = vmatprep.subr.mxu0 0.0
      %762 = vmatpush1.msra.mxu0 0.0
      %763 = vmatprep.subr.mxu0 0.0
      %764 = vmatpush1.msra.mxu0 0.0
      %765 = vmatprep.subr.mxu0 0.0
      %766 = vmatpush1.msra.mxu0 0.0
      %767 = vmatprep.subr.mxu0 0.0
      %768 = vmatpush1.msra.mxu0 0.0
      %769 = vmatprep.subr.mxu0 0.0
      %770 = vmatpush1.msra.mxu0 0.0
      %771 = vmatprep.subr.mxu0 0.0
      %772 = vmatpush1.msra.mxu0 0.0
      %773 = vmatprep.subr.mxu0 0.0
      %774 = vmatpush1.msra.mxu0 0.0
      %775 = vmatprep.mubr.f32.mxu0 0.0
      %776 = vmatmul.mubr.f32.gmra.mrb[0].mxu0 %v709
      %v777 = vpop.f32.mrb[0].mxu0
      %v778 = vadd.f32 0.0, %v777
      %v779 = vpop.f32.mrb[0].mxu0
      %v780 = vadd.f32 0.0, %v779
      %781 = vdwg.mxu0
      %782 = vmatprep.subr.mxu0 %v240
      %783 = vmatpush1.msra.mxu0 %v238
      %784 = vmatprep.subr.mxu0 0.0
      %785 = vmatpush1.msra.mxu0 0.0
      %786 = vmatprep.subr.mxu0 0.0
      %787 = vmatpush1.msra.mxu0 0.0
      %788 = vmatprep.subr.mxu0 0.0
      %789 = vmatpush1.msra.mxu0 0.0
      %790 = vmatprep.subr.mxu0 0.0
      %791 = vmatpush1.msra.mxu0 0.0
      %792 = vmatprep.subr.mxu0 0.0
      %793 = vmatpush1.msra.mxu0 0.0
      %794 = vmatprep.subr.mxu0 0.0
      %795 = vmatpush1.msra.mxu0 0.0
      %796 = vmatprep.subr.mxu0 0.0
      %797 = vmatpush1.msra.mxu0 0.0
      %798 = vmatprep.subr.mxu0 0.0
      %799 = vmatpush1.msra.mxu0 0.0
      %800 = vmatprep.subr.mxu0 0.0
      %801 = vmatpush1.msra.mxu0 0.0
      %802 = vmatprep.subr.mxu0 0.0
      %803 = vmatpush1.msra.mxu0 0.0
      %804 = vmatprep.subr.mxu0 0.0
      %805 = vmatpush1.msra.mxu0 0.0
      %806 = vmatprep.subr.mxu0 0.0
      %807 = vmatpush1.msra.mxu0 0.0
      %808 = vmatprep.subr.mxu0 0.0
      %809 = vmatpush1.msra.mxu0 0.0
      %810 = vmatprep.subr.mxu0 0.0
      %811 = vmatpush1.msra.mxu0 0.0
      %812 = vmatprep.subr.mxu0 0.0
      %813 = vmatpush1.msra.mxu0 0.0
      %814 = vmatprep.subr.mxu0 0.0
      %815 = vmatpush1.msra.mxu0 0.0
      %816 = vmatprep.subr.mxu0 0.0
      %817 = vmatpush1.msra.mxu0 0.0
      %818 = vmatprep.subr.mxu0 0.0
      %819 = vmatpush1.msra.mxu0 0.0
      %820 = vmatprep.subr.mxu0 0.0
      %821 = vmatpush1.msra.mxu0 0.0
      %822 = vmatprep.subr.mxu0 0.0
      %823 = vmatpush1.msra.mxu0 0.0
      %824 = vmatprep.subr.mxu0 0.0
      %825 = vmatpush1.msra.mxu0 0.0
      %826 = vmatprep.subr.mxu0 0.0
      %827 = vmatpush1.msra.mxu0 0.0
      %828 = vmatprep.subr.mxu0 0.0
      %829 = vmatpush1.msra.mxu0 0.0
      %830 = vmatprep.subr.mxu0 0.0
      %831 = vmatpush1.msra.mxu0 0.0
      %832 = vmatprep.subr.mxu0 0.0
      %833 = vmatpush1.msra.mxu0 0.0
      %834 = vmatprep.subr.mxu0 0.0
      %835 = vmatpush1.msra.mxu0 0.0
      %836 = vmatprep.subr.mxu0 0.0
      %837 = vmatpush1.msra.mxu0 0.0
      %838 = vmatprep.subr.mxu0 0.0
      %839 = vmatpush1.msra.mxu0 0.0
      %840 = vmatprep.subr.mxu0 0.0
      %841 = vmatpush1.msra.mxu0 0.0
      %842 = vmatprep.subr.mxu0 0.0
      %843 = vmatpush1.msra.mxu0 0.0
      %844 = vmatprep.subr.mxu0 0.0
      %845 = vmatpush1.msra.mxu0 0.0
      %846 = vmatprep.mubr.f32.mxu0 0.0
      %847 = vmatmul.mubr.f32.gmra.mrb[0].mxu0 %v709
      %v848 = vpop.f32.mrb[0].mxu0
      %v849 = vadd.f32 0.0, %v848
      %v850 = vpop.f32.mrb[0].mxu0
      %v851 = vadd.f32 0.0, %v850
      %852 = vdwg.mxu0
      %v854 = vsel %vm229, %v705, 0
      %856 = vmatprep.subr.mxu0 %v388
      %857 = vmatpush1.msra.mxu0 %v386
      %858 = vmatprep.subr.mxu0 0.0
      %859 = vmatpush1.msra.mxu0 0.0
      %860 = vmatprep.subr.mxu0 0.0
      %861 = vmatpush1.msra.mxu0 0.0
      %862 = vmatprep.subr.mxu0 0.0
      %863 = vmatpush1.msra.mxu0 0.0
      %864 = vmatprep.subr.mxu0 0.0
      %865 = vmatpush1.msra.mxu0 0.0
      %866 = vmatprep.subr.mxu0 0.0
      %867 = vmatpush1.msra.mxu0 0.0
      %868 = vmatprep.subr.mxu0 0.0
      %869 = vmatpush1.msra.mxu0 0.0
      %870 = vmatprep.subr.mxu0 0.0
      %871 = vmatpush1.msra.mxu0 0.0
      %872 = vmatprep.subr.mxu0 0.0
      %873 = vmatpush1.msra.mxu0 0.0
      %874 = vmatprep.subr.mxu0 0.0
      %875 = vmatpush1.msra.mxu0 0.0
      %876 = vmatprep.subr.mxu0 0.0
      %877 = vmatpush1.msra.mxu0 0.0
      %878 = vmatprep.subr.mxu0 0.0
      %879 = vmatpush1.msra.mxu0 0.0
      %880 = vmatprep.subr.mxu0 0.0
      %881 = vmatpush1.msra.mxu0 0.0
      %882 = vmatprep.subr.mxu0 0.0
      %883 = vmatpush1.msra.mxu0 0.0
      %884 = vmatprep.subr.mxu0 0.0
      %885 = vmatpush1.msra.mxu0 0.0
      %886 = vmatprep.subr.mxu0 0.0
      %887 = vmatpush1.msra.mxu0 0.0
      %888 = vmatprep.subr.mxu0 0.0
      %889 = vmatpush1.msra.mxu0 0.0
      %890 = vmatprep.subr.mxu0 0.0
      %891 = vmatpush1.msra.mxu0 0.0
      %892 = vmatprep.subr.mxu0 0.0
      %893 = vmatpush1.msra.mxu0 0.0
      %894 = vmatprep.subr.mxu0 0.0
      %895 = vmatpush1.msra.mxu0 0.0
      %896 = vmatprep.subr.mxu0 0.0
      %897 = vmatpush1.msra.mxu0 0.0
      %898 = vmatprep.subr.mxu0 0.0
      %899 = vmatpush1.msra.mxu0 0.0
      %900 = vmatprep.subr.mxu0 0.0
      %901 = vmatpush1.msra.mxu0 0.0
      %902 = vmatprep.subr.mxu0 0.0
      %903 = vmatpush1.msra.mxu0 0.0
      %904 = vmatprep.subr.mxu0 0.0
      %905 = vmatpush1.msra.mxu0 0.0
      %906 = vmatprep.subr.mxu0 0.0
      %907 = vmatpush1.msra.mxu0 0.0
      %908 = vmatprep.subr.mxu0 0.0
      %909 = vmatpush1.msra.mxu0 0.0
      %910 = vmatprep.subr.mxu0 0.0
      %911 = vmatpush1.msra.mxu0 0.0
      %912 = vmatprep.subr.mxu0 0.0
      %913 = vmatpush1.msra.mxu0 0.0
      %914 = vmatprep.subr.mxu0 0.0
      %915 = vmatpush1.msra.mxu0 0.0
      %916 = vmatprep.subr.mxu0 0.0
      %917 = vmatpush1.msra.mxu0 0.0
      %918 = vmatprep.subr.mxu0 0.0
      %919 = vmatpush1.msra.mxu0 0.0
      %920 = vmatprep.mubr.f32.mxu0 0.0
      %921 = vmatmul.mubr.f32.gmra.mrb[0].mxu0 %v854
      %v922 = vpop.f32.mrb[0].mxu0
      %v923 = vadd.f32 %v778, %v922
      %v924 = vpop.f32.mrb[0].mxu0
      %v925 = vadd.f32 %v780, %v924
      %926 = vdwg.mxu0
      %927 = vmatprep.subr.mxu0 %v392
      %928 = vmatpush1.msra.mxu0 %v390
      %929 = vmatprep.subr.mxu0 0.0
      %930 = vmatpush1.msra.mxu0 0.0
      %931 = vmatprep.subr.mxu0 0.0
      %932 = vmatpush1.msra.mxu0 0.0
      %933 = vmatprep.subr.mxu0 0.0
      %934 = vmatpush1.msra.mxu0 0.0
      %935 = vmatprep.subr.mxu0 0.0
      %936 = vmatpush1.msra.mxu0 0.0
      %937 = vmatprep.subr.mxu0 0.0
      %938 = vmatpush1.msra.mxu0 0.0
      %939 = vmatprep.subr.mxu0 0.0
      %940 = vmatpush1.msra.mxu0 0.0
      %941 = vmatprep.subr.mxu0 0.0
      %942 = vmatpush1.msra.mxu0 0.0
      %943 = vmatprep.subr.mxu0 0.0
      %944 = vmatpush1.msra.mxu0 0.0
      %945 = vmatprep.subr.mxu0 0.0
      %946 = vmatpush1.msra.mxu0 0.0
      %947 = vmatprep.subr.mxu0 0.0
      %948 = vmatpush1.msra.mxu0 0.0
      %949 = vmatprep.subr.mxu0 0.0
      %950 = vmatpush1.msra.mxu0 0.0
      %951 = vmatprep.subr.mxu0 0.0
      %952 = vmatpush1.msra.mxu0 0.0
      %953 = vmatprep.subr.mxu0 0.0
      %954 = vmatpush1.msra.mxu0 0.0
      %955 = vmatprep.subr.mxu0 0.0
      %956 = vmatpush1.msra.mxu0 0.0
      %957 = vmatprep.subr.mxu0 0.0
      %958 = vmatpush1.msra.mxu0 0.0
      %959 = vmatprep.subr.mxu0 0.0
      %960 = vmatpush1.msra.mxu0 0.0
      %961 = vmatprep.subr.mxu0 0.0
      %962 = vmatpush1.msra.mxu0 0.0
      %963 = vmatprep.subr.mxu0 0.0
      %964 = vmatpush1.msra.mxu0 0.0
      %965 = vmatprep.subr.mxu0 0.0
      %966 = vmatpush1.msra.mxu0 0.0
      %967 = vmatprep.subr.mxu0 0.0
      %968 = vmatpush1.msra.mxu0 0.0
      %969 = vmatprep.subr.mxu0 0.0
      %970 = vmatpush1.msra.mxu0 0.0
      %971 = vmatprep.subr.mxu0 0.0
      %972 = vmatpush1.msra.mxu0 0.0
      %973 = vmatprep.subr.mxu0 0.0
      %974 = vmatpush1.msra.mxu0 0.0
      %975 = vmatprep.subr.mxu0 0.0
      %976 = vmatpush1.msra.mxu0 0.0
      %977 = vmatprep.subr.mxu0 0.0
      %978 = vmatpush1.msra.mxu0 0.0
      %979 = vmatprep.subr.mxu0 0.0
      %980 = vmatpush1.msra.mxu0 0.0
      %981 = vmatprep.subr.mxu0 0.0
      %982 = vmatpush1.msra.mxu0 0.0
      %983 = vmatprep.subr.mxu0 0.0
      %984 = vmatpush1.msra.mxu0 0.0
      %985 = vmatprep.subr.mxu0 0.0
      %986 = vmatpush1.msra.mxu0 0.0
      %987 = vmatprep.subr.mxu0 0.0
      %988 = vmatpush1.msra.mxu0 0.0
      %989 = vmatprep.subr.mxu0 0.0
      %990 = vmatpush1.msra.mxu0 0.0
      %991 = vmatprep.mubr.f32.mxu0 0.0
      %992 = vmatmul.mubr.f32.gmra.mrb[0].mxu0 %v854
      %v993 = vpop.f32.mrb[0].mxu0
      %v994 = vadd.f32 %v849, %v993
      %v995 = vpop.f32.mrb[0].mxu0
      %v996 = vadd.f32 %v851, %v995
      %997 = vdwg.mxu0
      %s998 = scalar_lea.vmem %s1, 20
      %v999 = vld [vmem:[%s998] sm:$0xf]
      %v1001 = vsel %vm229, %v999, 0
      %1003 = vmatprep.subr.mxu0 %v554
      %1004 = vmatpush1.msra.mxu0 %v552
      %1005 = vmatprep.subr.mxu0 0.0
      %1006 = vmatpush1.msra.mxu0 0.0
      %1007 = vmatprep.subr.mxu0 0.0
      %1008 = vmatpush1.msra.mxu0 0.0
      %1009 = vmatprep.subr.mxu0 0.0
      %1010 = vmatpush1.msra.mxu0 0.0
      %1011 = vmatprep.subr.mxu0 0.0
      %1012 = vmatpush1.msra.mxu0 0.0
      %1013 = vmatprep.subr.mxu0 0.0
      %1014 = vmatpush1.msra.mxu0 0.0
      %1015 = vmatprep.subr.mxu0 0.0
      %1016 = vmatpush1.msra.mxu0 0.0
      %1017 = vmatprep.subr.mxu0 0.0
      %1018 = vmatpush1.msra.mxu0 0.0
      %1019 = vmatprep.subr.mxu0 0.0
      %1020 = vmatpush1.msra.mxu0 0.0
      %1021 = vmatprep.subr.mxu0 0.0
      %1022 = vmatpush1.msra.mxu0 0.0
      %1023 = vmatprep.subr.mxu0 0.0
      %1024 = vmatpush1.msra.mxu0 0.0
      %1025 = vmatprep.subr.mxu0 0.0
      %1026 = vmatpush1.msra.mxu0 0.0
      %1027 = vmatprep.subr.mxu0 0.0
      %1028 = vmatpush1.msra.mxu0 0.0
      %1029 = vmatprep.subr.mxu0 0.0
      %1030 = vmatpush1.msra.mxu0 0.0
      %1031 = vmatprep.subr.mxu0 0.0
      %1032 = vmatpush1.msra.mxu0 0.0
      %1033 = vmatprep.subr.mxu0 0.0
      %1034 = vmatpush1.msra.mxu0 0.0
      %1035 = vmatprep.subr.mxu0 0.0
      %1036 = vmatpush1.msra.mxu0 0.0
      %1037 = vmatprep.subr.mxu0 0.0
      %1038 = vmatpush1.msra.mxu0 0.0
      %1039 = vmatprep.subr.mxu0 0.0
      %1040 = vmatpush1.msra.mxu0 0.0
      %1041 = vmatprep.subr.mxu0 0.0
      %1042 = vmatpush1.msra.mxu0 0.0
      %1043 = vmatprep.subr.mxu0 0.0
      %1044 = vmatpush1.msra.mxu0 0.0
      %1045 = vmatprep.subr.mxu0 0.0
      %1046 = vmatpush1.msra.mxu0 0.0
      %1047 = vmatprep.subr.mxu0 0.0
      %1048 = vmatpush1.msra.mxu0 0.0
      %1049 = vmatprep.subr.mxu0 0.0
      %1050 = vmatpush1.msra.mxu0 0.0
      %1051 = vmatprep.subr.mxu0 0.0
      %1052 = vmatpush1.msra.mxu0 0.0
      %1053 = vmatprep.subr.mxu0 0.0
      %1054 = vmatpush1.msra.mxu0 0.0
      %1055 = vmatprep.subr.mxu0 0.0
      %1056 = vmatpush1.msra.mxu0 0.0
      %1057 = vmatprep.subr.mxu0 0.0
      %1058 = vmatpush1.msra.mxu0 0.0
      %1059 = vmatprep.subr.mxu0 0.0
      %1060 = vmatpush1.msra.mxu0 0.0
      %1061 = vmatprep.subr.mxu0 0.0
      %1062 = vmatpush1.msra.mxu0 0.0
      %1063 = vmatprep.subr.mxu0 0.0
      %1064 = vmatpush1.msra.mxu0 0.0
      %1065 = vmatprep.subr.mxu0 0.0
      %1066 = vmatpush1.msra.mxu0 0.0
      %1067 = vmatprep.mubr.f32.mxu0 0.0
      %1068 = vmatmul.mubr.f32.gmra.mrb[0].mxu0 %v1001
      %v1069 = vpop.f32.mrb[0].mxu0
      %v1070 = vadd.f32 0.0, %v1069
      %v1071 = vpop.f32.mrb[0].mxu0
      %v1072 = vadd.f32 0.0, %v1071
      %1073 = vdwg.mxu0
      %1074 = vmatprep.subr.mxu0 %v558
      %1075 = vmatpush1.msra.mxu0 %v556
      %1076 = vmatprep.subr.mxu0 0.0
      %1077 = vmatpush1.msra.mxu0 0.0
      %1078 = vmatprep.subr.mxu0 0.0
      %1079 = vmatpush1.msra.mxu0 0.0
      %1080 = vmatprep.subr.mxu0 0.0
      %1081 = vmatpush1.msra.mxu0 0.0
      %1082 = vmatprep.subr.mxu0 0.0
      %1083 = vmatpush1.msra.mxu0 0.0
      %1084 = vmatprep.subr.mxu0 0.0
      %1085 = vmatpush1.msra.mxu0 0.0
      %1086 = vmatprep.subr.mxu0 0.0
      %1087 = vmatpush1.msra.mxu0 0.0
      %1088 = vmatprep.subr.mxu0 0.0
      %1089 = vmatpush1.msra.mxu0 0.0
      %1090 = vmatprep.subr.mxu0 0.0
      %1091 = vmatpush1.msra.mxu0 0.0
      %1092 = vmatprep.subr.mxu0 0.0
      %1093 = vmatpush1.msra.mxu0 0.0
      %1094 = vmatprep.subr.mxu0 0.0
      %1095 = vmatpush1.msra.mxu0 0.0
      %1096 = vmatprep.subr.mxu0 0.0
      %1097 = vmatpush1.msra.mxu0 0.0
      %1098 = vmatprep.subr.mxu0 0.0
      %1099 = vmatpush1.msra.mxu0 0.0
      %1100 = vmatprep.subr.mxu0 0.0
      %1101 = vmatpush1.msra.mxu0 0.0
      %1102 = vmatprep.subr.mxu0 0.0
      %1103 = vmatpush1.msra.mxu0 0.0
      %1104 = vmatprep.subr.mxu0 0.0
      %1105 = vmatpush1.msra.mxu0 0.0
      %1106 = vmatprep.subr.mxu0 0.0
      %1107 = vmatpush1.msra.mxu0 0.0
      %1108 = vmatprep.subr.mxu0 0.0
      %1109 = vmatpush1.msra.mxu0 0.0
      %1110 = vmatprep.subr.mxu0 0.0
      %1111 = vmatpush1.msra.mxu0 0.0
      %1112 = vmatprep.subr.mxu0 0.0
      %1113 = vmatpush1.msra.mxu0 0.0
      %1114 = vmatprep.subr.mxu0 0.0
      %1115 = vmatpush1.msra.mxu0 0.0
      %1116 = vmatprep.subr.mxu0 0.0
      %1117 = vmatpush1.msra.mxu0 0.0
      %1118 = vmatprep.subr.mxu0 0.0
      %1119 = vmatpush1.msra.mxu0 0.0
      %1120 = vmatprep.subr.mxu0 0.0
      %1121 = vmatpush1.msra.mxu0 0.0
      %1122 = vmatprep.subr.mxu0 0.0
      %1123 = vmatpush1.msra.mxu0 0.0
      %1124 = vmatprep.subr.mxu0 0.0
      %1125 = vmatpush1.msra.mxu0 0.0
      %1126 = vmatprep.subr.mxu0 0.0
      %1127 = vmatpush1.msra.mxu0 0.0
      %1128 = vmatprep.subr.mxu0 0.0
      %1129 = vmatpush1.msra.mxu0 0.0
      %1130 = vmatprep.subr.mxu0 0.0
      %1131 = vmatpush1.msra.mxu0 0.0
      %1132 = vmatprep.subr.mxu0 0.0
      %1133 = vmatpush1.msra.mxu0 0.0
      %1134 = vmatprep.subr.mxu0 0.0
      %1135 = vmatpush1.msra.mxu0 0.0
      %1136 = vmatprep.subr.mxu0 0.0
      %1137 = vmatpush1.msra.mxu0 0.0
      %1138 = vmatprep.mubr.f32.mxu0 0.0
      %1139 = vmatmul.mubr.f32.gmra.mrb[0].mxu0 %v1001
      %v1140 = vpop.f32.mrb[0].mxu0
      %v1141 = vadd.f32 0.0, %v1140
      %v1142 = vpop.f32.mrb[0].mxu0
      %v1143 = vadd.f32 0.0, %v1142
      %1144 = vdwg.mxu0
      %v1145 = vadd.f32 %v923, %v1070
      %v1146 = vadd.f32 %v925, %v1072
      %v1147 = vadd.f32 %v994, %v1141
      %v1148 = vadd.f32 %v996, %v1143
      %1153 = vrot.lane.b32.xlu0 %v1145, 104
      %v1154 = vpop.permute.xlu0 %1153
      %1155 = vrot.lane.b32.xlu0 %v1146, 104
      %v1156 = vpop.permute.xlu0 %1155
      %1157 = vrot.lane.b32.xlu0 %v1147, 104
      %v1158 = vpop.permute.xlu0 %1157
      %1159 = vrot.lane.b32.xlu0 %v1148, 104
      %v1160 = vpop.permute.xlu0 %1159
      %vm1161 = vcmask 850944
      %v1162 = vsel %vm1161, %v1154, %v1156
      %v1163 = vsel %vm1161, %v1156, %v1158
      %v1164 = vsel %vm1161, %v1158, %v1160
      %v1168 = vadd.f32 %v701, %v1162
      %v1169 = vadd.f32 %v702, %v1163
      %v1170 = vadd.f32 %v703, %v1164
      %s1171 = scalar_lea.vmem %s1, 24
      %v1172 = vld [vmem:[%s1171] sm:$0xf]
      %s1173 = scalar_lea.vmem %s1, 28
      %v1174 = vld [vmem:[%s1173] sm:$0xf]
      %v1176 = vsel %vm229, %v1174, 0
      %1178 = vmatprep.subr.mxu0 %v236
      %1179 = vmatpush1.msra.mxu0 %v234
      %1180 = vmatprep.subr.mxu0 0.0
      %1181 = vmatpush1.msra.mxu0 0.0
      %1182 = vmatprep.subr.mxu0 0.0
      %1183 = vmatpush1.msra.mxu0 0.0
      %1184 = vmatprep.subr.mxu0 0.0
      %1185 = vmatpush1.msra.mxu0 0.0
      %1186 = vmatprep.subr.mxu0 0.0
      %1187 = vmatpush1.msra.mxu0 0.0
      %1188 = vmatprep.subr.mxu0 0.0
      %1189 = vmatpush1.msra.mxu0 0.0
      %1190 = vmatprep.subr.mxu0 0.0
      %1191 = vmatpush1.msra.mxu0 0.0
      %1192 = vmatprep.subr.mxu0 0.0
      %1193 = vmatpush1.msra.mxu0 0.0
      %1194 = vmatprep.subr.mxu0 0.0
      %1195 = vmatpush1.msra.mxu0 0.0
      %1196 = vmatprep.subr.mxu0 0.0
      %1197 = vmatpush1.msra.mxu0 0.0
      %1198 = vmatprep.subr.mxu0 0.0
      %1199 = vmatpush1.msra.mxu0 0.0
      %1200 = vmatprep.subr.mxu0 0.0
      %1201 = vmatpush1.msra.mxu0 0.0
      %1202 = vmatprep.subr.mxu0 0.0
      %1203 = vmatpush1.msra.mxu0 0.0
      %1204 = vmatprep.subr.mxu0 0.0
      %1205 = vmatpush1.msra.mxu0 0.0
      %1206 = vmatprep.subr.mxu0 0.0
      %1207 = vmatpush1.msra.mxu0 0.0
      %1208 = vmatprep.subr.mxu0 0.0
      %1209 = vmatpush1.msra.mxu0 0.0
      %1210 = vmatprep.subr.mxu0 0.0
      %1211 = vmatpush1.msra.mxu0 0.0
      %1212 = vmatprep.subr.mxu0 0.0
      %1213 = vmatpush1.msra.mxu0 0.0
      %1214 = vmatprep.subr.mxu0 0.0
      %1215 = vmatpush1.msra.mxu0 0.0
      %1216 = vmatprep.subr.mxu0 0.0
      %1217 = vmatpush1.msra.mxu0 0.0
      %1218 = vmatprep.subr.mxu0 0.0
      %1219 = vmatpush1.msra.mxu0 0.0
      %1220 = vmatprep.subr.mxu0 0.0
      %1221 = vmatpush1.msra.mxu0 0.0
      %1222 = vmatprep.subr.mxu0 0.0
      %1223 = vmatpush1.msra.mxu0 0.0
      %1224 = vmatprep.subr.mxu0 0.0
      %1225 = vmatpush1.msra.mxu0 0.0
      %1226 = vmatprep.subr.mxu0 0.0
      %1227 = vmatpush1.msra.mxu0 0.0
      %1228 = vmatprep.subr.mxu0 0.0
      %1229 = vmatpush1.msra.mxu0 0.0
      %1230 = vmatprep.subr.mxu0 0.0
      %1231 = vmatpush1.msra.mxu0 0.0
      %1232 = vmatprep.subr.mxu0 0.0
      %1233 = vmatpush1.msra.mxu0 0.0
      %1234 = vmatprep.subr.mxu0 0.0
      %1235 = vmatpush1.msra.mxu0 0.0
      %1236 = vmatprep.subr.mxu0 0.0
      %1237 = vmatpush1.msra.mxu0 0.0
      %1238 = vmatprep.subr.mxu0 0.0
      %1239 = vmatpush1.msra.mxu0 0.0
      %1240 = vmatprep.subr.mxu0 0.0
      %1241 = vmatpush1.msra.mxu0 0.0
      %1242 = vmatprep.mubr.f32.mxu0 0.0
      %1243 = vmatmul.mubr.f32.gmra.mrb[0].mxu0 %v1176
      %v1244 = vpop.f32.mrb[0].mxu0
      %v1245 = vadd.f32 0.0, %v1244
      %v1246 = vpop.f32.mrb[0].mxu0
      %v1247 = vadd.f32 0.0, %v1246
      %1248 = vdwg.mxu0
      %1249 = vmatprep.subr.mxu0 %v240
      %1250 = vmatpush1.msra.mxu0 %v238
      %1251 = vmatprep.subr.mxu0 0.0
      %1252 = vmatpush1.msra.mxu0 0.0
      %1253 = vmatprep.subr.mxu0 0.0
      %1254 = vmatpush1.msra.mxu0 0.0
      %1255 = vmatprep.subr.mxu0 0.0
      %1256 = vmatpush1.msra.mxu0 0.0
      %1257 = vmatprep.subr.mxu0 0.0
      %1258 = vmatpush1.msra.mxu0 0.0
      %1259 = vmatprep.subr.mxu0 0.0
      %1260 = vmatpush1.msra.mxu0 0.0
      %1261 = vmatprep.subr.mxu0 0.0
      %1262 = vmatpush1.msra.mxu0 0.0
      %1263 = vmatprep.subr.mxu0 0.0
      %1264 = vmatpush1.msra.mxu0 0.0
      %1265 = vmatprep.subr.mxu0 0.0
      %1266 = vmatpush1.msra.mxu0 0.0
      %1267 = vmatprep.subr.mxu0 0.0
      %1268 = vmatpush1.msra.mxu0 0.0
      %1269 = vmatprep.subr.mxu0 0.0
      %1270 = vmatpush1.msra.mxu0 0.0
      %1271 = vmatprep.subr.mxu0 0.0
      %1272 = vmatpush1.msra.mxu0 0.0
      %1273 = vmatprep.subr.mxu0 0.0
      %1274 = vmatpush1.msra.mxu0 0.0
      %1275 = vmatprep.subr.mxu0 0.0
      %1276 = vmatpush1.msra.mxu0 0.0
      %1277 = vmatprep.subr.mxu0 0.0
      %1278 = vmatpush1.msra.mxu0 0.0
      %1279 = vmatprep.subr.mxu0 0.0
      %1280 = vmatpush1.msra.mxu0 0.0
      %1281 = vmatprep.subr.mxu0 0.0
      %1282 = vmatpush1.msra.mxu0 0.0
      %1283 = vmatprep.subr.mxu0 0.0
      %1284 = vmatpush1.msra.mxu0 0.0
      %1285 = vmatprep.subr.mxu0 0.0
      %1286 = vmatpush1.msra.mxu0 0.0
      %1287 = vmatprep.subr.mxu0 0.0
      %1288 = vmatpush1.msra.mxu0 0.0
      %1289 = vmatprep.subr.mxu0 0.0
      %1290 = vmatpush1.msra.mxu0 0.0
      %1291 = vmatprep.subr.mxu0 0.0
      %1292 = vmatpush1.msra.mxu0 0.0
      %1293 = vmatprep.subr.mxu0 0.0
      %1294 = vmatpush1.msra.mxu0 0.0
      %1295 = vmatprep.subr.mxu0 0.0
      %1296 = vmatpush1.msra.mxu0 0.0
      %1297 = vmatprep.subr.mxu0 0.0
      %1298 = vmatpush1.msra.mxu0 0.0
      %1299 = vmatprep.subr.mxu0 0.0
      %1300 = vmatpush1.msra.mxu0 0.0
      %1301 = vmatprep.subr.mxu0 0.0
      %1302 = vmatpush1.msra.mxu0 0.0
      %1303 = vmatprep.subr.mxu0 0.0
      %1304 = vmatpush1.msra.mxu0 0.0
      %1305 = vmatprep.subr.mxu0 0.0
      %1306 = vmatpush1.msra.mxu0 0.0
      %1307 = vmatprep.subr.mxu0 0.0
      %1308 = vmatpush1.msra.mxu0 0.0
      %1309 = vmatprep.subr.mxu0 0.0
      %1310 = vmatpush1.msra.mxu0 0.0
      %1311 = vmatprep.subr.mxu0 0.0
      %1312 = vmatpush1.msra.mxu0 0.0
      %1313 = vmatprep.mubr.f32.mxu0 0.0
      %1314 = vmatmul.mubr.f32.gmra.mrb[0].mxu0 %v1176
      %v1315 = vpop.f32.mrb[0].mxu0
      %v1316 = vadd.f32 0.0, %v1315
      %v1317 = vpop.f32.mrb[0].mxu0
      %v1318 = vadd.f32 0.0, %v1317
      %1319 = vdwg.mxu0
      %v1321 = vsel %vm229, %v1172, 0
      %1323 = vmatprep.subr.mxu0 %v388
      %1324 = vmatpush1.msra.mxu0 %v386
      %1325 = vmatprep.subr.mxu0 0.0
      %1326 = vmatpush1.msra.mxu0 0.0
      %1327 = vmatprep.subr.mxu0 0.0
      %1328 = vmatpush1.msra.mxu0 0.0
      %1329 = vmatprep.subr.mxu0 0.0
      %1330 = vmatpush1.msra.mxu0 0.0
      %1331 = vmatprep.subr.mxu0 0.0
      %1332 = vmatpush1.msra.mxu0 0.0
      %1333 = vmatprep.subr.mxu0 0.0
      %1334 = vmatpush1.msra.mxu0 0.0
      %1335 = vmatprep.subr.mxu0 0.0
      %1336 = vmatpush1.msra.mxu0 0.0
      %1337 = vmatprep.subr.mxu0 0.0
      %1338 = vmatpush1.msra.mxu0 0.0
      %1339 = vmatprep.subr.mxu0 0.0
      %1340 = vmatpush1.msra.mxu0 0.0
      %1341 = vmatprep.subr.mxu0 0.0
      %1342 = vmatpush1.msra.mxu0 0.0
      %1343 = vmatprep.subr.mxu0 0.0
      %1344 = vmatpush1.msra.mxu0 0.0
      %1345 = vmatprep.subr.mxu0 0.0
      %1346 = vmatpush1.msra.mxu0 0.0
      %1347 = vmatprep.subr.mxu0 0.0
      %1348 = vmatpush1.msra.mxu0 0.0
      %1349 = vmatprep.subr.mxu0 0.0
      %1350 = vmatpush1.msra.mxu0 0.0
      %1351 = vmatprep.subr.mxu0 0.0
      %1352 = vmatpush1.msra.mxu0 0.0
      %1353 = vmatprep.subr.mxu0 0.0
      %1354 = vmatpush1.msra.mxu0 0.0
      %1355 = vmatprep.subr.mxu0 0.0
      %1356 = vmatpush1.msra.mxu0 0.0
      %1357 = vmatprep.subr.mxu0 0.0
      %1358 = vmatpush1.msra.mxu0 0.0
      %1359 = vmatprep.subr.mxu0 0.0
      %1360 = vmatpush1.msra.mxu0 0.0
      %1361 = vmatprep.subr.mxu0 0.0
      %1362 = vmatpush1.msra.mxu0 0.0
      %1363 = vmatprep.subr.mxu0 0.0
      %1364 = vmatpush1.msra.mxu0 0.0
      %1365 = vmatprep.subr.mxu0 0.0
      %1366 = vmatpush1.msra.mxu0 0.0
      %1367 = vmatprep.subr.mxu0 0.0
      %1368 = vmatpush1.msra.mxu0 0.0
      %1369 = vmatprep.subr.mxu0 0.0
      %1370 = vmatpush1.msra.mxu0 0.0
      %1371 = vmatprep.subr.mxu0 0.0
      %1372 = vmatpush1.msra.mxu0 0.0
      %1373 = vmatprep.subr.mxu0 0.0
      %1374 = vmatpush1.msra.mxu0 0.0
      %1375 = vmatprep.subr.mxu0 0.0
      %1376 = vmatpush1.msra.mxu0 0.0
      %1377 = vmatprep.subr.mxu0 0.0
      %1378 = vmatpush1.msra.mxu0 0.0
      %1379 = vmatprep.subr.mxu0 0.0
      %1380 = vmatpush1.msra.mxu0 0.0
      %1381 = vmatprep.subr.mxu0 0.0
      %1382 = vmatpush1.msra.mxu0 0.0
      %1383 = vmatprep.subr.mxu0 0.0
      %1384 = vmatpush1.msra.mxu0 0.0
      %1385 = vmatprep.subr.mxu0 0.0
      %1386 = vmatpush1.msra.mxu0 0.0
      %1387 = vmatprep.mubr.f32.mxu0 0.0
      %1388 = vmatmul.mubr.f32.gmra.mrb[0].mxu0 %v1321
      %v1389 = vpop.f32.mrb[0].mxu0
      %v1390 = vadd.f32 %v1245, %v1389
      %v1391 = vpop.f32.mrb[0].mxu0
      %v1392 = vadd.f32 %v1247, %v1391
      %1393 = vdwg.mxu0
      %1394 = vmatprep.subr.mxu0 %v392
      %1395 = vmatpush1.msra.mxu0 %v390
      %1396 = vmatprep.subr.mxu0 0.0
      %1397 = vmatpush1.msra.mxu0 0.0
      %1398 = vmatprep.subr.mxu0 0.0
      %1399 = vmatpush1.msra.mxu0 0.0
      %1400 = vmatprep.subr.mxu0 0.0
      %1401 = vmatpush1.msra.mxu0 0.0
      %1402 = vmatprep.subr.mxu0 0.0
      %1403 = vmatpush1.msra.mxu0 0.0
      %1404 = vmatprep.subr.mxu0 0.0
      %1405 = vmatpush1.msra.mxu0 0.0
      %1406 = vmatprep.subr.mxu0 0.0
      %1407 = vmatpush1.msra.mxu0 0.0
      %1408 = vmatprep.subr.mxu0 0.0
      %1409 = vmatpush1.msra.mxu0 0.0
      %1410 = vmatprep.subr.mxu0 0.0
      %1411 = vmatpush1.msra.mxu0 0.0
      %1412 = vmatprep.subr.mxu0 0.0
      %1413 = vmatpush1.msra.mxu0 0.0
      %1414 = vmatprep.subr.mxu0 0.0
      %1415 = vmatpush1.msra.mxu0 0.0
      %1416 = vmatprep.subr.mxu0 0.0
      %1417 = vmatpush1.msra.mxu0 0.0
      %1418 = vmatprep.subr.mxu0 0.0
      %1419 = vmatpush1.msra.mxu0 0.0
      %1420 = vmatprep.subr.mxu0 0.0
      %1421 = vmatpush1.msra.mxu0 0.0
      %1422 = vmatprep.subr.mxu0 0.0
      %1423 = vmatpush1.msra.mxu0 0.0
      %1424 = vmatprep.subr.mxu0 0.0
      %1425 = vmatpush1.msra.mxu0 0.0
      %1426 = vmatprep.subr.mxu0 0.0
      %1427 = vmatpush1.msra.mxu0 0.0
      %1428 = vmatprep.subr.mxu0 0.0
      %1429 = vmatpush1.msra.mxu0 0.0
      %1430 = vmatprep.subr.mxu0 0.0
      %1431 = vmatpush1.msra.mxu0 0.0
      %1432 = vmatprep.subr.mxu0 0.0
      %1433 = vmatpush1.msra.mxu0 0.0
      %1434 = vmatprep.subr.mxu0 0.0
      %1435 = vmatpush1.msra.mxu0 0.0
      %1436 = vmatprep.subr.mxu0 0.0
      %1437 = vmatpush1.msra.mxu0 0.0
      %1438 = vmatprep.subr.mxu0 0.0
      %1439 = vmatpush1.msra.mxu0 0.0
      %1440 = vmatprep.subr.mxu0 0.0
      %1441 = vmatpush1.msra.mxu0 0.0
      %1442 = vmatprep.subr.mxu0 0.0
      %1443 = vmatpush1.msra.mxu0 0.0
      %1444 = vmatprep.subr.mxu0 0.0
      %1445 = vmatpush1.msra.mxu0 0.0
      %1446 = vmatprep.subr.mxu0 0.0
      %1447 = vmatpush1.msra.mxu0 0.0
      %1448 = vmatprep.subr.mxu0 0.0
      %1449 = vmatpush1.msra.mxu0 0.0
      %1450 = vmatprep.subr.mxu0 0.0
      %1451 = vmatpush1.msra.mxu0 0.0
      %1452 = vmatprep.subr.mxu0 0.0
      %1453 = vmatpush1.msra.mxu0 0.0
      %1454 = vmatprep.subr.mxu0 0.0
      %1455 = vmatpush1.msra.mxu0 0.0
      %1456 = vmatprep.subr.mxu0 0.0
      %1457 = vmatpush1.msra.mxu0 0.0
      %1458 = vmatprep.mubr.f32.mxu0 0.0
      %1459 = vmatmul.mubr.f32.gmra.mrb[0].mxu0 %v1321
      %v1460 = vpop.f32.mrb[0].mxu0
      %v1461 = vadd.f32 %v1316, %v1460
      %v1462 = vpop.f32.mrb[0].mxu0
      %v1463 = vadd.f32 %v1318, %v1462
      %1464 = vdwg.mxu0
      %s1465 = scalar_lea.vmem %s1, 32
      %v1466 = vld [vmem:[%s1465] sm:$0xf]
      %v1468 = vsel %vm229, %v1466, 0
      %1470 = vmatprep.subr.mxu0 %v554
      %1471 = vmatpush1.msra.mxu0 %v552
      %1472 = vmatprep.subr.mxu0 0.0
      %1473 = vmatpush1.msra.mxu0 0.0
      %1474 = vmatprep.subr.mxu0 0.0
      %1475 = vmatpush1.msra.mxu0 0.0
      %1476 = vmatprep.subr.mxu0 0.0
      %1477 = vmatpush1.msra.mxu0 0.0
      %1478 = vmatprep.subr.mxu0 0.0
      %1479 = vmatpush1.msra.mxu0 0.0
      %1480 = vmatprep.subr.mxu0 0.0
      %1481 = vmatpush1.msra.mxu0 0.0
      %1482 = vmatprep.subr.mxu0 0.0
      %1483 = vmatpush1.msra.mxu0 0.0
      %1484 = vmatprep.subr.mxu0 0.0
      %1485 = vmatpush1.msra.mxu0 0.0
      %1486 = vmatprep.subr.mxu0 0.0
      %1487 = vmatpush1.msra.mxu0 0.0
      %1488 = vmatprep.subr.mxu0 0.0
      %1489 = vmatpush1.msra.mxu0 0.0
      %1490 = vmatprep.subr.mxu0 0.0
      %1491 = vmatpush1.msra.mxu0 0.0
      %1492 = vmatprep.subr.mxu0 0.0
      %1493 = vmatpush1.msra.mxu0 0.0
      %1494 = vmatprep.subr.mxu0 0.0
      %1495 = vmatpush1.msra.mxu0 0.0
      %1496 = vmatprep.subr.mxu0 0.0
      %1497 = vmatpush1.msra.mxu0 0.0
      %1498 = vmatprep.subr.mxu0 0.0
      %1499 = vmatpush1.msra.mxu0 0.0
      %1500 = vmatprep.subr.mxu0 0.0
      %1501 = vmatpush1.msra.mxu0 0.0
      %1502 = vmatprep.subr.mxu0 0.0
      %1503 = vmatpush1.msra.mxu0 0.0
      %1504 = vmatprep.subr.mxu0 0.0
      %1505 = vmatpush1.msra.mxu0 0.0
      %1506 = vmatprep.subr.mxu0 0.0
      %1507 = vmatpush1.msra.mxu0 0.0
      %1508 = vmatprep.subr.mxu0 0.0
      %1509 = vmatpush1.msra.mxu0 0.0
      %1510 = vmatprep.subr.mxu0 0.0
      %1511 = vmatpush1.msra.mxu0 0.0
      %1512 = vmatprep.subr.mxu0 0.0
      %1513 = vmatpush1.msra.mxu0 0.0
      %1514 = vmatprep.subr.mxu0 0.0
      %1515 = vmatpush1.msra.mxu0 0.0
      %1516 = vmatprep.subr.mxu0 0.0
      %1517 = vmatpush1.msra.mxu0 0.0
      %1518 = vmatprep.subr.mxu0 0.0
      %1519 = vmatpush1.msra.mxu0 0.0
      %1520 = vmatprep.subr.mxu0 0.0
      %1521 = vmatpush1.msra.mxu0 0.0
      %1522 = vmatprep.subr.mxu0 0.0
      %1523 = vmatpush1.msra.mxu0 0.0
      %1524 = vmatprep.subr.mxu0 0.0
      %1525 = vmatpush1.msra.mxu0 0.0
      %1526 = vmatprep.subr.mxu0 0.0
      %1527 = vmatpush1.msra.mxu0 0.0
      %1528 = vmatprep.subr.mxu0 0.0
      %1529 = vmatpush1.msra.mxu0 0.0
      %1530 = vmatprep.subr.mxu0 0.0
      %1531 = vmatpush1.msra.mxu0 0.0
      %1532 = vmatprep.subr.mxu0 0.0
      %1533 = vmatpush1.msra.mxu0 0.0
      %1534 = vmatprep.mubr.f32.mxu0 0.0
      %1535 = vmatmul.mubr.f32.gmra.mrb[0].mxu0 %v1468
      %v1536 = vpop.f32.mrb[0].mxu0
      %v1537 = vadd.f32 0.0, %v1536
      %v1538 = vpop.f32.mrb[0].mxu0
      %v1539 = vadd.f32 0.0, %v1538
      %1540 = vdwg.mxu0
      %1541 = vmatprep.subr.mxu0 %v558
      %1542 = vmatpush1.msra.mxu0 %v556
      %1543 = vmatprep.subr.mxu0 0.0
      %1544 = vmatpush1.msra.mxu0 0.0
      %1545 = vmatprep.subr.mxu0 0.0
      %1546 = vmatpush1.msra.mxu0 0.0
      %1547 = vmatprep.subr.mxu0 0.0
      %1548 = vmatpush1.msra.mxu0 0.0
      %1549 = vmatprep.subr.mxu0 0.0
      %1550 = vmatpush1.msra.mxu0 0.0
      %1551 = vmatprep.subr.mxu0 0.0
      %1552 = vmatpush1.msra.mxu0 0.0
      %1553 = vmatprep.subr.mxu0 0.0
      %1554 = vmatpush1.msra.mxu0 0.0
      %1555 = vmatprep.subr.mxu0 0.0
      %1556 = vmatpush1.msra.mxu0 0.0
      %1557 = vmatprep.subr.mxu0 0.0
      %1558 = vmatpush1.msra.mxu0 0.0
      %1559 = vmatprep.subr.mxu0 0.0
      %1560 = vmatpush1.msra.mxu0 0.0
      %1561 = vmatprep.subr.mxu0 0.0
      %1562 = vmatpush1.msra.mxu0 0.0
      %1563 = vmatprep.subr.mxu0 0.0
      %1564 = vmatpush1.msra.mxu0 0.0
      %1565 = vmatprep.subr.mxu0 0.0
      %1566 = vmatpush1.msra.mxu0 0.0
      %1567 = vmatprep.subr.mxu0 0.0
      %1568 = vmatpush1.msra.mxu0 0.0
      %1569 = vmatprep.subr.mxu0 0.0
      %1570 = vmatpush1.msra.mxu0 0.0
      %1571 = vmatprep.subr.mxu0 0.0
      %1572 = vmatpush1.msra.mxu0 0.0
      %1573 = vmatprep.subr.mxu0 0.0
      %1574 = vmatpush1.msra.mxu0 0.0
      %1575 = vmatprep.subr.mxu0 0.0
      %1576 = vmatpush1.msra.mxu0 0.0
      %1577 = vmatprep.subr.mxu0 0.0
      %1578 = vmatpush1.msra.mxu0 0.0
      %1579 = vmatprep.subr.mxu0 0.0
      %1580 = vmatpush1.msra.mxu0 0.0
      %1581 = vmatprep.subr.mxu0 0.0
      %1582 = vmatpush1.msra.mxu0 0.0
      %1583 = vmatprep.subr.mxu0 0.0
      %1584 = vmatpush1.msra.mxu0 0.0
      %1585 = vmatprep.subr.mxu0 0.0
      %1586 = vmatpush1.msra.mxu0 0.0
      %1587 = vmatprep.subr.mxu0 0.0
      %1588 = vmatpush1.msra.mxu0 0.0
      %1589 = vmatprep.subr.mxu0 0.0
      %1590 = vmatpush1.msra.mxu0 0.0
      %1591 = vmatprep.subr.mxu0 0.0
      %1592 = vmatpush1.msra.mxu0 0.0
      %1593 = vmatprep.subr.mxu0 0.0
      %1594 = vmatpush1.msra.mxu0 0.0
      %1595 = vmatprep.subr.mxu0 0.0
      %1596 = vmatpush1.msra.mxu0 0.0
      %1597 = vmatprep.subr.mxu0 0.0
      %1598 = vmatpush1.msra.mxu0 0.0
      %1599 = vmatprep.subr.mxu0 0.0
      %1600 = vmatpush1.msra.mxu0 0.0
      %1601 = vmatprep.subr.mxu0 0.0
      %1602 = vmatpush1.msra.mxu0 0.0
      %1603 = vmatprep.subr.mxu0 0.0
      %1604 = vmatpush1.msra.mxu0 0.0
      %1605 = vmatprep.mubr.f32.mxu0 0.0
      %1606 = vmatmul.mubr.f32.gmra.mrb[0].mxu0 %v1468
      %v1607 = vpop.f32.mrb[0].mxu0
      %v1608 = vadd.f32 0.0, %v1607
      %v1609 = vpop.f32.mrb[0].mxu0
      %v1610 = vadd.f32 0.0, %v1609
      %1611 = vdwg.mxu0
      %v1612 = vadd.f32 %v1390, %v1537
      %v1613 = vadd.f32 %v1392, %v1539
      %v1614 = vadd.f32 %v1461, %v1608
      %v1615 = vadd.f32 %v1463, %v1610
      %1620 = vrot.lane.b32.xlu0 %v1612, 80
      %v1621 = vpop.permute.xlu0 %1620
      %1622 = vrot.lane.b32.xlu0 %v1613, 80
      %v1623 = vpop.permute.xlu0 %1622
      %1624 = vrot.lane.b32.xlu0 %v1614, 80
      %v1625 = vpop.permute.xlu0 %1624
      %1626 = vrot.lane.b32.xlu0 %v1615, 80
      %v1627 = vpop.permute.xlu0 %1626
      %vm1628 = vcmask 654336
      %v1629 = vsel %vm1628, %v1621, %v1623
      %v1630 = vsel %vm1628, %v1623, %v1625
      %v1631 = vsel %vm1628, %v1625, %v1627
      %v1635 = vadd.f32 %v1168, %v1629
      %v1636 = vadd.f32 %v1169, %v1630
      %v1637 = vadd.f32 %v1170, %v1631
      %v1638 = vld [vmem:[%s2] sm:$0xf]
      %1640 = vset.pattern.permute.xlu0 0
      %1641 = vperm.xlu0 %1640, %v1638
      %v1642 = vpop.permute.xlu0 %1641
      %v1644 = vadd.f32 %v1635, %v1642
      %v1645 = vadd.f32 %v1636, %v1642
      %v1646 = vadd.f32 %v1637, %v1642
      %v1649 = vcombine.low %v1644, %v1645
      %1651 = vst [vmem:[%s206] sm:$0xff] %v1649
      %1652 = vst [vmem:[%s206 + $0x8] sm:$0xf] %v1646
      %s1653 = smul.u32 3, %s19
      %p1654 = scmp.lt.s32.totalorder %s18, 1
      %s1655 = scalar_select %p1654, %s18, 1
      %p1656 = scmp.lt.s32.totalorder %s1653, 2
      %s1657 = scalar_select %p1656, %s1653, 2
      %s1658 = smul.addr %s1655, 3
      %s1659 = sadd.s32 %s1657, %s1658
      %s1660 = smul.addr %s1659, 4
      %s1661 = scalar_lea.vmem %s3, %s1660
      // Predicated region
      $region33: #{rbx2sr_nores_forward.1} parent=31 // pred_check
        %p1662 = pneg %p116
      $region34: #{rbx2sr_nores_forward.1} parent=31 // pred_check_branch
        %1664 = sbr.rel (%p1662) target = $region36
      $region35: #{rbx2sr_nores_forward.1} parent=31 // pred_region
        %s1665 = smul.u32 3, %s19
      $region36: #{rbx2sr_nores_forward.1} parent=31 // pred_fallthru
        _
    $region32: #{rbx2sr_nores_forward.1} parent=5 // pred_fallthru
      _
    %p1666 = scmp.le.s32.totalorder 2, %s9
    // Predicated region
    $region37: #{rbx2sr_nores_forward.1} parent=5 // pred_check
      %p1667 = pneg %p1666
    $region38: #{rbx2sr_nores_forward.1} parent=5 // pred_check_branch
      %1669 = sbr.rel (%p1667) target = $region40
    $region39: #{rbx2sr_nores_forward.1} parent=5 // pred_region
      %s1670 = ssub.s32 %s9, 2
      // Predicated region
      $region41: #{rbx2sr_nores_forward.1} parent=39 // pred_check
        %p1671 = pneg %p122
      $region42: #{rbx2sr_nores_forward.1} parent=39 // pred_check_branch
        %1673 = sbr.rel (%p1671) target = $region44
      $region43: #{rbx2sr_nores_forward.1} parent=39 // pred_region
        %s1674 = smul.u32 3, %s21
        %p1675 = scmp.lt.s32.totalorder %s20, 1
        %s1676 = scalar_select %p1675, %s20, 1
        %p1677 = scmp.lt.s32.totalorder %s1674, 2
        %s1678 = scalar_select %p1677, %s1674, 2
        %s1679 = smul.addr %s1676, 3
        %s1680 = sadd.s32 %s1678, %s1679
        %s1681 = smul.addr %s1680, 4
        %s1682 = scalar_lea.vmem %s3, %s1681
      $region44: #{rbx2sr_nores_forward.1} parent=39 // pred_fallthru
        _
    $region40: #{rbx2sr_nores_forward.1} parent=5 // pred_fallthru
      _
  $region6: #{rbx2sr_nores_forward.1} parent=0 // loop_footer
    %s13 = sadd.s32 1, %s9
  $region7: #{rbx2sr_nores_forward.1} parent=0 // loop_footer_branch
    %8 = sbr.rel target = $region3
  $region8: #{rbx2sr_nores_forward.1} parent=0 // loop_exit
    _

</llo_original>
